<compile_context>
chip_gen: v7x
topology: tpu7x:2x2x1
jax: 0.10.0
libtpu: 0.0.40
codegen_flags: <defaults>
</compile_context>

<pallas_src>
import functools

import jax
import jax.numpy as jnp
from jax.experimental import pallas as pl
from jax.experimental.pallas import tpu as pltpu


def _round_up(x, m):
    return (x + m - 1) // m * m


def _pick_tile_h(h_out, w_out, c_in_p, c_out_p, budget_bytes=6 * 1024 * 1024):
    """Largest output-row tile whose tile-resident data fits a VMEM budget."""
    per_row = (w_out * c_in_p * 4 * 2        # f32 acc + y
               + w_out * c_in_p * 2          # bf16 matmul lhs
               + w_out * c_out_p * 4         # f32 y2
               + 2 * w_out * c_out_p * 4)    # double-buffered output block
    return int(max(1, min(h_out, budget_bytes // max(per_row, 1))))


def _conv_dw_kernel(xp_ref, wdw_ref, b1_ref, wpw_ref, b2_ref, o_ref, *,
                    tile_h, w_out, stride):
    """One (batch element, output-row tile) per grid step.

    xp_ref : (1, Hp, Wp, Cin_p)  zero-padded NHWC image (resident across tiles)
    wdw_ref: (3, 3, Cin_p)       depthwise weights, BN1 scale folded in (f32)
    b1_ref : (1, Cin_p)          folded BN1 shift
    wpw_ref: (Cin_p, Cout_p)     pointwise weights, BN2 scale folded in (bf16)
    b2_ref : (1, Cout_p)         folded BN2 shift
    o_ref  : (1, tile_h, w_out, Cout_p)
    """
    c_in = wdw_ref.shape[-1]
    t = pl.program_id(1)
    r0 = pl.multiple_of(t * (tile_h * stride), tile_h * stride)

    # ---- depthwise 3x3: tap windows read straight from the ref ----
    acc = jnp.zeros((tile_h, w_out, c_in), jnp.float32)
    for kh in range(3):
        for kw in range(3):
            if stride == 1:
                win = xp_ref[0, pl.ds(r0 + kh, tile_h), pl.ds(kw, w_out), :]
            else:
                # stride > 1: read the contiguous row band, subsample in-regs.
                band = xp_ref[0, pl.ds(r0 + kh, (tile_h - 1) * stride + 1), :, :]
                win = band[::stride,
                           kw:kw + (w_out - 1) * stride + 1:stride, :]
            acc = acc + win.astype(jnp.float32) * wdw_ref[kh, kw, :]

    # ---- BN1 shift (scale folded into weights) + LeakyReLU(0.01) ----
    y = acc + b1_ref[0]
    y = jnp.where(y > 0, y, 0.01 * y)

    # ---- pointwise 1x1 on the MXU in bf16 (f32 accumulate) ----
    y2 = jnp.dot(y.reshape(tile_h * w_out, c_in).astype(jnp.bfloat16),
                 wpw_ref[...],
                 preferred_element_type=jnp.float32)

    # ---- BN2 shift + LeakyReLU(0.01) ----
    y2 = y2 + b2_ref[0]
    y2 = jnp.where(y2 > 0, y2, 0.01 * y2)

    o_ref[0] = y2.reshape(tile_h, w_out, -1).astype(o_ref.dtype)


def conv_dw_forward(x_nchw, params, stride=1):
    """Forward pass of conv_dw. x_nchw: (N, Cin, H, W) float32."""
    eps = 1e-5
    w_dw = params["w_dw"]        # (Cin, 1, 3, 3)  — PyTorch depthwise layout
    w_pw = params["w_pw"]        # (Cout, Cin, 1, 1)
    c_in = w_dw.shape[0]
    c_out = w_pw.shape[0]

    # Fold eval-mode BN into per-channel scale/shift; scales go into the conv
    # weights, shifts stay as kernel-side adds.
    s1 = params["gamma1"] / jnp.sqrt(params["var1"] + eps)
    b1 = params["beta1"] - params["mean1"] * s1
    s2 = params["gamma2"] / jnp.sqrt(params["var2"] + eps)
    b2 = params["beta2"] - params["mean2"] * s2

    # Lane-dense channel padding (multiples of 128) for MXU K/N and dense vst.
    # (For genuinely tiny real channel counts a VPU pointwise would be better.)
    c_in_p = _round_up(c_in, 128)
    c_out_p = _round_up(c_out, 128)

    w_dw_k = jnp.transpose(w_dw[:, 0, :, :], (1, 2, 0)) * s1[None, None, :]
    w_dw_k = jnp.pad(w_dw_k, ((0, 0), (0, 0), (0, c_in_p - c_in)))
    w_dw_k = w_dw_k.astype(jnp.float32)

    w_pw_k = jnp.transpose(w_pw[:, :, 0, 0], (1, 0)) * s2[None, :]
    w_pw_k = jnp.pad(w_pw_k, ((0, c_in_p - c_in), (0, c_out_p - c_out)))
    w_pw_k = w_pw_k.astype(jnp.bfloat16)

    b1_k = jnp.pad(b1, (0, c_in_p - c_in)).reshape(1, c_in_p).astype(jnp.float32)
    b2_k = jnp.pad(b2, (0, c_out_p - c_out)).reshape(1, c_out_p).astype(jnp.float32)

    n, _, h, w = x_nchw.shape
    h_out = (h + 2 - 3) // stride + 1
    w_out = (w + 2 - 3) // stride + 1
    w_out_p = _round_up(w_out, 8)          # sublane-clean (H*W, C) collapse

    tile_h = _pick_tile_h(h_out, w_out_p, c_in_p, c_out_p)
    n_tiles = (h_out + tile_h - 1) // tile_h
    h_out_p = n_tiles * tile_h

    hp = max((h_out_p - 1) * stride + 3, h + 2)
    wp = max((w_out_p - 1) * stride + 3, w + 2)

    # NCHW -> NHWC plus conv / tile / channel zero-padding in one fused copy.
    x = jnp.transpose(x_nchw, (0, 2, 3, 1))
    xp = jnp.pad(x, ((0, 0), (1, hp - h - 1), (1, wp - w - 1),
                     (0, c_in_p - c_in)))

    kernel = functools.partial(_conv_dw_kernel, tile_h=tile_h,
                               w_out=w_out_p, stride=stride)

    out = pl.pallas_call(
        kernel,
        out_shape=jax.ShapeDtypeStruct((n, h_out_p, w_out_p, c_out_p),
                                       x_nchw.dtype),
        grid_spec=pltpu.PrefetchScalarGridSpec(
            num_scalar_prefetch=0,
            grid=(n, n_tiles),
            in_specs=[
                # Padded image: block index constant across row tiles, so it is
                # DMA'd once per batch element and reused.
                pl.BlockSpec((1, hp, wp, c_in_p), lambda i, t: (i, 0, 0, 0)),
                pl.BlockSpec((3, 3, c_in_p), lambda i, t: (0, 0, 0)),
                pl.BlockSpec((1, c_in_p), lambda i, t: (0, 0)),
                pl.BlockSpec((c_in_p, c_out_p), lambda i, t: (0, 0)),
                pl.BlockSpec((1, c_out_p), lambda i, t: (0, 0)),
            ],
            out_specs=pl.BlockSpec((1, tile_h, w_out_p, c_out_p),
                                   lambda i, t: (i, t, 0, 0)),
        ),
        compiler_params=pltpu.CompilerParams(
            dimension_semantics=("parallel", "parallel"),
            vmem_limit_bytes=48 * 1024 * 1024,
        ),
    )(xp, w_dw_k, b1_k, w_pw_k, b2_k)

    # Strip channel / spatial padding, NHWC -> NCHW to match PyTorch.
    out = out[:, :h_out, :w_out, :c_out]
    return jnp.transpose(out, (0, 3, 1, 2))


def _reference_forward(x_nchw, params, stride=1):
    """Plain-JAX reference (NCHW, lax conv) for a correctness check."""
    eps = 1e-5
    w_dw, w_pw = params["w_dw"], params["w_pw"]
    c_in = w_dw.shape[0]

    y = jax.lax.conv_general_dilated(
        x_nchw, w_dw, window_strides=(stride, stride),
        padding=((1, 1), (1, 1)), feature_group_count=c_in,
        dimension_numbers=("NCHW", "OIHW", "NCHW"))
    s1 = params["gamma1"] / jnp.sqrt(params["var1"] + eps)
    b1 = params["beta1"] - params["mean1"] * s1
    y = y * s1[None, :, None, None] + b1[None, :, None, None]
    y = jnp.where(y > 0, y, 0.01 * y)

    y = jax.lax.conv_general_dilated(
        y, w_pw, window_strides=(1, 1), padding=((0, 0), (0, 0)),
        dimension_numbers=("NCHW", "OIHW", "NCHW"))
    s2 = params["gamma2"] / jnp.sqrt(params["var2"] + eps)
    b2 = params["beta2"] - params["mean2"] * s2
    y = y * s2[None, :, None, None] + b2[None, :, None, None]
    y = jnp.where(y > 0, y, 0.01 * y)
    return y


def init_params(key, c_in, c_out):
    ks = jax.random.split(key, 10)
    return {
        "w_dw": jax.random.normal(ks[0], (c_in, 1, 3, 3), jnp.float32) * 0.2,
        "w_pw": jax.random.normal(ks[1], (c_out, c_in, 1, 1), jnp.float32) * 0.2,
        "gamma1": jax.random.uniform(ks[2], (c_in,), jnp.float32, 0.5, 1.5),
        "beta1": jax.random.normal(ks[3], (c_in,), jnp.float32) * 0.1,
        "mean1": jax.random.normal(ks[4], (c_in,), jnp.float32) * 0.1,
        "var1": jax.random.uniform(ks[5], (c_in,), jnp.float32, 0.5, 1.5),
        "gamma2": jax.random.uniform(ks[6], (c_out,), jnp.float32, 0.5, 1.5),
        "beta2": jax.random.normal(ks[7], (c_out,), jnp.float32) * 0.1,
        "mean2": jax.random.normal(ks[8], (c_out,), jnp.float32) * 0.1,
        "var2": jax.random.uniform(ks[9], (c_out,), jnp.float32, 0.5, 1.5),
    }


if __name__ == "__main__":
    key = jax.random.PRNGKey(0)
    k_x, k_p = jax.random.split(key)

    N, C_IN, C_OUT, H, W = 2, 4, 8, 16, 16
    STRIDE = 1

    x = jax.random.normal(k_x, (N, C_IN, H, W), jnp.float32)
    params = init_params(k_p, C_IN, C_OUT)

    out = jax.block_until_ready(conv_dw_forward(x, params, stride=STRIDE))
    ref = jax.block_until_ready(_reference_forward(x, params, stride=STRIDE))

    assert out.shape == ref.shape
    err = float(jnp.max(jnp.abs(out - ref)))
    scale = float(jnp.max(jnp.abs(ref)))
    # bf16 pointwise matmul -> loosened tolerance per review.
    assert err <= 3e-2 * max(1.0, scale), f"mismatch vs reference: {err}"

    print("KERNEL_OK")
</pallas_src>

<mosaic_0001>
module attributes {stable_mosaic.version = 11 : i64} {
  func.func @_conv_dw_kernel(%arg0: i32, %arg1: i32, %arg2: memref<1x18x18x128xf32, #tpu.memory_space<vmem>>, %arg3: memref<3x3x128xf32, #tpu.memory_space<vmem>>, %arg4: memref<1x128xf32, #tpu.memory_space<vmem>>, %arg5: memref<128x128xbf16, #tpu.memory_space<vmem>>, %arg6: memref<1x128xf32, #tpu.memory_space<vmem>>, %arg7: memref<1x16x16x128xf32, #tpu.memory_space<vmem>>) attributes {dimension_semantics = [#tpu.dimension_semantics<parallel>, #tpu.dimension_semantics<parallel>], iteration_bounds = array<i64: 2, 1>, scalar_prefetch = 0 : i64, scratch_operands = 0 : i64, tpu.core_type = #tpu.core_type<tc>, window_params = [{transform_indices = @transform_0, window_bounds = array<i64: 1, 18, 18, 128>}, {pipeline_mode = #tpu.pipeline_mode<synchronous>, transform_indices = @transform_1, window_bounds = array<i64: 3, 3, 128>}, {pipeline_mode = #tpu.pipeline_mode<synchronous>, transform_indices = @transform_2, window_bounds = array<i64: 1, 128>}, {pipeline_mode = #tpu.pipeline_mode<synchronous>, transform_indices = @transform_3, window_bounds = array<i64: 128, 128>}, {pipeline_mode = #tpu.pipeline_mode<synchronous>, transform_indices = @transform_4, window_bounds = array<i64: 1, 128>}, {transform_indices = @transform_5, window_bounds = array<i64: 1, 16, 16, 128>}]} {
    %c16_i32 = arith.constant 16 : i32
    %0 = arith.muli %arg1, %c16_i32 : i32
    %1 = tpu.assume_multiple %0, 16 : i32
    %cst = arith.constant 0.000000e+00 : f32
    %2 = vector.broadcast %cst : f32 to vector<16x16x128xf32>
    %c0_i32 = arith.constant 0 : i32
    %3 = arith.addi %1, %c0_i32 : i32
    %c0 = arith.constant 0 : index
    %4 = arith.index_cast %3 : i32 to index
    %c0_0 = arith.constant 0 : index
    %c0_1 = arith.constant 0 : index
    %5 = vector.load %arg2[%c0, %4, %c0_0, %c0_1] : memref<1x18x18x128xf32, #tpu.memory_space<vmem>>, vector<1x16x16x128xf32>
    %6 = vector.shape_cast %5 : vector<1x16x16x128xf32> to vector<16x16x128xf32>
    %c0_2 = arith.constant 0 : index
    %c0_3 = arith.constant 0 : index
    %c0_4 = arith.constant 0 : index
    %7 = vector.load %arg3[%c0_2, %c0_3, %c0_4] : memref<3x3x128xf32, #tpu.memory_space<vmem>>, vector<1x1x128xf32>
    %8 = vector.shape_cast %7 : vector<1x1x128xf32> to vector<128xf32>
    %9 = vector.shape_cast %8 : vector<128xf32> to vector<1x1x128xf32>
    %10 = vector.broadcast %9 : vector<1x1x128xf32> to vector<16x16x128xf32>
    %11 = arith.mulf %6, %10 : vector<16x16x128xf32>
    %12 = arith.addf %2, %11 : vector<16x16x128xf32>
    %c0_i32_5 = arith.constant 0 : i32
    %13 = arith.addi %1, %c0_i32_5 : i32
    %c0_6 = arith.constant 0 : index
    %14 = arith.index_cast %13 : i32 to index
    %c1 = arith.constant 1 : index
    %c0_7 = arith.constant 0 : index
    %15 = vector.load %arg2[%c0_6, %14, %c1, %c0_7] : memref<1x18x18x128xf32, #tpu.memory_space<vmem>>, vector<1x16x16x128xf32>
    %16 = vector.shape_cast %15 : vector<1x16x16x128xf32> to vector<16x16x128xf32>
    %c0_8 = arith.constant 0 : index
    %c1_9 = arith.constant 1 : index
    %c0_10 = arith.constant 0 : index
    %17 = vector.load %arg3[%c0_8, %c1_9, %c0_10] : memref<3x3x128xf32, #tpu.memory_space<vmem>>, vector<1x1x128xf32>
    %18 = vector.shape_cast %17 : vector<1x1x128xf32> to vector<128xf32>
    %19 = vector.shape_cast %18 : vector<128xf32> to vector<1x1x128xf32>
    %20 = vector.broadcast %19 : vector<1x1x128xf32> to vector<16x16x128xf32>
    %21 = arith.mulf %16, %20 : vector<16x16x128xf32>
    %22 = arith.addf %12, %21 : vector<16x16x128xf32>
    %c0_i32_11 = arith.constant 0 : i32
    %23 = arith.addi %1, %c0_i32_11 : i32
    %c0_12 = arith.constant 0 : index
    %24 = arith.index_cast %23 : i32 to index
    %c2 = arith.constant 2 : index
    %c0_13 = arith.constant 0 : index
    %25 = vector.load %arg2[%c0_12, %24, %c2, %c0_13] : memref<1x18x18x128xf32, #tpu.memory_space<vmem>>, vector<1x16x16x128xf32>
    %26 = vector.shape_cast %25 : vector<1x16x16x128xf32> to vector<16x16x128xf32>
    %c0_14 = arith.constant 0 : index
    %c2_15 = arith.constant 2 : index
    %c0_16 = arith.constant 0 : index
    %27 = vector.load %arg3[%c0_14, %c2_15, %c0_16] : memref<3x3x128xf32, #tpu.memory_space<vmem>>, vector<1x1x128xf32>
    %28 = vector.shape_cast %27 : vector<1x1x128xf32> to vector<128xf32>
    %29 = vector.shape_cast %28 : vector<128xf32> to vector<1x1x128xf32>
    %30 = vector.broadcast %29 : vector<1x1x128xf32> to vector<16x16x128xf32>
    %31 = arith.mulf %26, %30 : vector<16x16x128xf32>
    %32 = arith.addf %22, %31 : vector<16x16x128xf32>
    %c1_i32 = arith.constant 1 : i32
    %33 = arith.addi %1, %c1_i32 : i32
    %c0_17 = arith.constant 0 : index
    %34 = arith.index_cast %33 : i32 to index
    %c0_18 = arith.constant 0 : index
    %c0_19 = arith.constant 0 : index
    %35 = vector.load %arg2[%c0_17, %34, %c0_18, %c0_19] : memref<1x18x18x128xf32, #tpu.memory_space<vmem>>, vector<1x16x16x128xf32>
    %36 = vector.shape_cast %35 : vector<1x16x16x128xf32> to vector<16x16x128xf32>
    %c1_20 = arith.constant 1 : index
    %c0_21 = arith.constant 0 : index
    %c0_22 = arith.constant 0 : index
    %37 = vector.load %arg3[%c1_20, %c0_21, %c0_22] : memref<3x3x128xf32, #tpu.memory_space<vmem>>, vector<1x1x128xf32>
    %38 = vector.shape_cast %37 : vector<1x1x128xf32> to vector<128xf32>
    %39 = vector.shape_cast %38 : vector<128xf32> to vector<1x1x128xf32>
    %40 = vector.broadcast %39 : vector<1x1x128xf32> to vector<16x16x128xf32>
    %41 = arith.mulf %36, %40 : vector<16x16x128xf32>
    %42 = arith.addf %32, %41 : vector<16x16x128xf32>
    %c1_i32_23 = arith.constant 1 : i32
    %43 = arith.addi %1, %c1_i32_23 : i32
    %c0_24 = arith.constant 0 : index
    %44 = arith.index_cast %43 : i32 to index
    %c1_25 = arith.constant 1 : index
    %c0_26 = arith.constant 0 : index
    %45 = vector.load %arg2[%c0_24, %44, %c1_25, %c0_26] : memref<1x18x18x128xf32, #tpu.memory_space<vmem>>, vector<1x16x16x128xf32>
    %46 = vector.shape_cast %45 : vector<1x16x16x128xf32> to vector<16x16x128xf32>
    %c1_27 = arith.constant 1 : index
    %c1_28 = arith.constant 1 : index
    %c0_29 = arith.constant 0 : index
    %47 = vector.load %arg3[%c1_27, %c1_28, %c0_29] : memref<3x3x128xf32, #tpu.memory_space<vmem>>, vector<1x1x128xf32>
    %48 = vector.shape_cast %47 : vector<1x1x128xf32> to vector<128xf32>
    %49 = vector.shape_cast %48 : vector<128xf32> to vector<1x1x128xf32>
    %50 = vector.broadcast %49 : vector<1x1x128xf32> to vector<16x16x128xf32>
    %51 = arith.mulf %46, %50 : vector<16x16x128xf32>
    %52 = arith.addf %42, %51 : vector<16x16x128xf32>
    %c1_i32_30 = arith.constant 1 : i32
    %53 = arith.addi %1, %c1_i32_30 : i32
    %c0_31 = arith.constant 0 : index
    %54 = arith.index_cast %53 : i32 to index
    %c2_32 = arith.constant 2 : index
    %c0_33 = arith.constant 0 : index
    %55 = vector.load %arg2[%c0_31, %54, %c2_32, %c0_33] : memref<1x18x18x128xf32, #tpu.memory_space<vmem>>, vector<1x16x16x128xf32>
    %56 = vector.shape_cast %55 : vector<1x16x16x128xf32> to vector<16x16x128xf32>
    %c1_34 = arith.constant 1 : index
    %c2_35 = arith.constant 2 : index
    %c0_36 = arith.constant 0 : index
    %57 = vector.load %arg3[%c1_34, %c2_35, %c0_36] : memref<3x3x128xf32, #tpu.memory_space<vmem>>, vector<1x1x128xf32>
    %58 = vector.shape_cast %57 : vector<1x1x128xf32> to vector<128xf32>
    %59 = vector.shape_cast %58 : vector<128xf32> to vector<1x1x128xf32>
    %60 = vector.broadcast %59 : vector<1x1x128xf32> to vector<16x16x128xf32>
    %61 = arith.mulf %56, %60 : vector<16x16x128xf32>
    %62 = arith.addf %52, %61 : vector<16x16x128xf32>
    %c2_i32 = arith.constant 2 : i32
    %63 = arith.addi %1, %c2_i32 : i32
    %c0_37 = arith.constant 0 : index
    %64 = arith.index_cast %63 : i32 to index
    %c0_38 = arith.constant 0 : index
    %c0_39 = arith.constant 0 : index
    %65 = vector.load %arg2[%c0_37, %64, %c0_38, %c0_39] : memref<1x18x18x128xf32, #tpu.memory_space<vmem>>, vector<1x16x16x128xf32>
    %66 = vector.shape_cast %65 : vector<1x16x16x128xf32> to vector<16x16x128xf32>
    %c2_40 = arith.constant 2 : index
    %c0_41 = arith.constant 0 : index
    %c0_42 = arith.constant 0 : index
    %67 = vector.load %arg3[%c2_40, %c0_41, %c0_42] : memref<3x3x128xf32, #tpu.memory_space<vmem>>, vector<1x1x128xf32>
    %68 = vector.shape_cast %67 : vector<1x1x128xf32> to vector<128xf32>
    %69 = vector.shape_cast %68 : vector<128xf32> to vector<1x1x128xf32>
    %70 = vector.broadcast %69 : vector<1x1x128xf32> to vector<16x16x128xf32>
    %71 = arith.mulf %66, %70 : vector<16x16x128xf32>
    %72 = arith.addf %62, %71 : vector<16x16x128xf32>
    %c2_i32_43 = arith.constant 2 : i32
    %73 = arith.addi %1, %c2_i32_43 : i32
    %c0_44 = arith.constant 0 : index
    %74 = arith.index_cast %73 : i32 to index
    %c1_45 = arith.constant 1 : index
    %c0_46 = arith.constant 0 : index
    %75 = vector.load %arg2[%c0_44, %74, %c1_45, %c0_46] : memref<1x18x18x128xf32, #tpu.memory_space<vmem>>, vector<1x16x16x128xf32>
    %76 = vector.shape_cast %75 : vector<1x16x16x128xf32> to vector<16x16x128xf32>
    %c2_47 = arith.constant 2 : index
    %c1_48 = arith.constant 1 : index
    %c0_49 = arith.constant 0 : index
    %77 = vector.load %arg3[%c2_47, %c1_48, %c0_49] : memref<3x3x128xf32, #tpu.memory_space<vmem>>, vector<1x1x128xf32>
    %78 = vector.shape_cast %77 : vector<1x1x128xf32> to vector<128xf32>
    %79 = vector.shape_cast %78 : vector<128xf32> to vector<1x1x128xf32>
    %80 = vector.broadcast %79 : vector<1x1x128xf32> to vector<16x16x128xf32>
    %81 = arith.mulf %76, %80 : vector<16x16x128xf32>
    %82 = arith.addf %72, %81 : vector<16x16x128xf32>
    %c2_i32_50 = arith.constant 2 : i32
    %83 = arith.addi %1, %c2_i32_50 : i32
    %c0_51 = arith.constant 0 : index
    %84 = arith.index_cast %83 : i32 to index
    %c2_52 = arith.constant 2 : index
    %c0_53 = arith.constant 0 : index
    %85 = vector.load %arg2[%c0_51, %84, %c2_52, %c0_53] : memref<1x18x18x128xf32, #tpu.memory_space<vmem>>, vector<1x16x16x128xf32>
    %86 = vector.shape_cast %85 : vector<1x16x16x128xf32> to vector<16x16x128xf32>
    %c2_54 = arith.constant 2 : index
    %c2_55 = arith.constant 2 : index
    %c0_56 = arith.constant 0 : index
    %87 = vector.load %arg3[%c2_54, %c2_55, %c0_56] : memref<3x3x128xf32, #tpu.memory_space<vmem>>, vector<1x1x128xf32>
    %88 = vector.shape_cast %87 : vector<1x1x128xf32> to vector<128xf32>
    %89 = vector.shape_cast %88 : vector<128xf32> to vector<1x1x128xf32>
    %90 = vector.broadcast %89 : vector<1x1x128xf32> to vector<16x16x128xf32>
    %91 = arith.mulf %86, %90 : vector<16x16x128xf32>
    %92 = arith.addf %82, %91 : vector<16x16x128xf32>
    %c0_57 = arith.constant 0 : index
    %c0_58 = arith.constant 0 : index
    %93 = vector.load %arg4[%c0_57, %c0_58] : memref<1x128xf32, #tpu.memory_space<vmem>>, vector<1x128xf32>
    %94 = vector.shape_cast %93 : vector<1x128xf32> to vector<128xf32>
    %95 = vector.shape_cast %94 : vector<128xf32> to vector<1x1x128xf32>
    %96 = vector.broadcast %95 : vector<1x1x128xf32> to vector<16x16x128xf32>
    %97 = arith.addf %92, %96 : vector<16x16x128xf32>
    %cst_59 = arith.constant 0.000000e+00 : f32
    %98 = vector.broadcast %cst_59 : f32 to vector<16x16x128xf32>
    %99 = arith.cmpf ogt, %97, %98 : vector<16x16x128xf32>
    %cst_60 = arith.constant 0.00999999977 : f32
    %100 = vector.broadcast %cst_60 : f32 to vector<16x16x128xf32>
    %101 = arith.mulf %100, %97 : vector<16x16x128xf32>
    %102 = arith.select %99, %97, %101 : vector<16x16x128xi1>, vector<16x16x128xf32>
    %103 = vector.shape_cast %102 : vector<16x16x128xf32> to vector<256x128xf32>
    %104 = arith.truncf %103 : vector<256x128xf32> to vector<256x128xbf16>
    %c0_61 = arith.constant 0 : index
    %c0_62 = arith.constant 0 : index
    %105 = vector.load %arg5[%c0_61, %c0_62] : memref<128x128xbf16, #tpu.memory_space<vmem>>, vector<128x128xbf16>
    %cst_63 = arith.constant dense<0.000000e+00> : vector<256x128xf32>
    %106 = tpu.matmul %104, %105, %cst_63 {dimension_numbers = #tpu.dot_dimension_numbers<[1], [0], [0], [1], [0, 0, 1, 1], [], []>} : vector<256x128xbf16>, vector<128x128xbf16>, vector<256x128xf32> -> vector<256x128xf32>
    %c0_64 = arith.constant 0 : index
    %c0_65 = arith.constant 0 : index
    %107 = vector.load %arg6[%c0_64, %c0_65] : memref<1x128xf32, #tpu.memory_space<vmem>>, vector<1x128xf32>
    %108 = vector.shape_cast %107 : vector<1x128xf32> to vector<128xf32>
    %109 = vector.shape_cast %108 : vector<128xf32> to vector<1x128xf32>
    %110 = vector.broadcast %109 : vector<1x128xf32> to vector<256x128xf32>
    %111 = arith.addf %106, %110 : vector<256x128xf32>
    %cst_66 = arith.constant 0.000000e+00 : f32
    %112 = vector.broadcast %cst_66 : f32 to vector<256x128xf32>
    %113 = arith.cmpf ogt, %111, %112 : vector<256x128xf32>
    %cst_67 = arith.constant 0.00999999977 : f32
    %114 = vector.broadcast %cst_67 : f32 to vector<256x128xf32>
    %115 = arith.mulf %114, %111 : vector<256x128xf32>
    %116 = arith.select %113, %111, %115 : vector<256x128xi1>, vector<256x128xf32>
    %117 = vector.shape_cast %116 : vector<256x128xf32> to vector<16x16x128xf32>
    %c0_68 = arith.constant 0 : index
    %c0_69 = arith.constant 0 : index
    %c0_70 = arith.constant 0 : index
    %c0_71 = arith.constant 0 : index
    %118 = vector.load %arg7[%c0_68, %c0_69, %c0_70, %c0_71] : memref<1x16x16x128xf32, #tpu.memory_space<vmem>>, vector<1x16x16x128xf32>
    %119 = vector.shape_cast %118 : vector<1x16x16x128xf32> to vector<16x16x128xf32>
    %120 = vector.shape_cast %117 : vector<16x16x128xf32> to vector<1x16x16x128xf32>
    tpu.vector_store %arg7[%c0_68, %c0_69, %c0_70, %c0_71], %120 {strides = array<i32>} : memref<1x16x16x128xf32, #tpu.memory_space<vmem>>, vector<1x16x16x128xf32>,
    return
  }
  func.func @transform_0(%arg0: i32, %arg1: i32) -> (i32, i32, i32, i32) {
    %c0_i32 = arith.constant 0 : i32
    %c0_i32_0 = arith.constant 0 : i32
    %c0_i32_1 = arith.constant 0 : i32
    %c0_i32_2 = arith.constant 0 : i32
    return %arg0, %c0_i32, %c0_i32_0, %c0_i32_1 : i32, i32, i32, i32
  }
  func.func @transform_1(%arg0: i32, %arg1: i32) -> (i32, i32, i32) {
    %c0_i32 = arith.constant 0 : i32
    %c0_i32_0 = arith.constant 0 : i32
    %c0_i32_1 = arith.constant 0 : i32
    %c0_i32_2 = arith.constant 0 : i32
    return %c0_i32, %c0_i32_0, %c0_i32_1 : i32, i32, i32
  }
  func.func @transform_2(%arg0: i32, %arg1: i32) -> (i32, i32) {
    %c0_i32 = arith.constant 0 : i32
    %c0_i32_0 = arith.constant 0 : i32
    %c0_i32_1 = arith.constant 0 : i32
    return %c0_i32, %c0_i32_0 : i32, i32
  }
  func.func @transform_3(%arg0: i32, %arg1: i32) -> (i32, i32) {
    %c0_i32 = arith.constant 0 : i32
    %c0_i32_0 = arith.constant 0 : i32
    %c0_i32_1 = arith.constant 0 : i32
    return %c0_i32, %c0_i32_0 : i32, i32
  }
  func.func @transform_4(%arg0: i32, %arg1: i32) -> (i32, i32) {
    %c0_i32 = arith.constant 0 : i32
    %c0_i32_0 = arith.constant 0 : i32
    %c0_i32_1 = arith.constant 0 : i32
    return %c0_i32, %c0_i32_0 : i32, i32
  }
  func.func @transform_5(%arg0: i32, %arg1: i32) -> (i32, i32, i32, i32) {
    %c0_i32 = arith.constant 0 : i32
    %c0_i32_0 = arith.constant 0 : i32
    %c0_i32_1 = arith.constant 0 : i32
    return %arg0, %arg1, %c0_i32, %c0_i32_0 : i32, i32, i32, i32
  }
}

</mosaic_0001>

<llo_original>
// kernel: tpu_custom_call.1
$region0: #{tpu_custom_call.1}
  #allocation0 [shape = 'u32[]', space=smem, size = 0x4, offset = 0x4, fixed_abs, tag = 'smem constant byte address 0x4 - core index']
  #allocation1 [shape = 'u32[144,128]{1,0:T(1,128)}', space=vmem, size = 0x12000, scoped, tag = 'internal scratch']
  %s0 = inlined_call_operand.vmem [shape: f32[2,18,18,128], index: 0, kind: input, shape index: {}]
  %s1 = inlined_call_operand.vmem [shape: f32[3,3,128], index: 1, kind: input, shape index: {}]
  %s2 = inlined_call_operand.vmem [shape: f32[1,128], index: 2, kind: input, shape index: {}]
  %s3 = inlined_call_operand.vmem [shape: bf16[128,128], index: 3, kind: input, shape index: {}]
  %s4 = inlined_call_operand.vmem [shape: f32[1,128], index: 4, kind: input, shape index: {}]
  %s5 = inlined_call_operand.hbm [shape: f32[2,16,16,128], index: 5, kind: output, shape index: {}]
  %s6 = sld [smem:[#allocation0]]
  $region53: #{tpu_custom_call.1} parent=0
    _
  %s8 = ssub.s32 1, %s6
  %s9 = scalar_select 0, %s8, %s6
  $region1: #{tpu_custom_call.1} parent=0
    #allocation2 [shape = 'u8[262144]{0}', space=vmem, size = 0x40000, scoped, tag = 'output window, operand 0']
    #allocation3 [shape = 's32[2]{0}', space=sflag, size = 0x8, scoped, tag = 'scoped memory for tpu_custom_call.1']
    %10 = vsyncpa [#allocation3], 0
    %s11 = scalar_lea.sflag [#allocation3], 1
    %12 = vsyncpa %s11, 0
    loop: start=0, step=1, limit=4
    $region2: #{tpu_custom_call.1} parent=1 // loop_pre_header
      _
    $region3: #{tpu_custom_call.1} parent=1 // loop_header
      %s14 = sphi 0, %s18
      %p15 = scmp.ge.s32.totalorder %s14, 4
      %s21 = sphi 0, %s33
      %s22 = sphi 0, %s29
      %s23 = sphi 0, %s21
      %s24 = sphi 0, %s22
      %s25 = sphi 0, %s23
      %s26 = sphi 0, %s24
      %s36 = sphi 0, %s38
      %s39 = sphi 0, %s36
      %s40 = sphi 0, %s39
      %s56 = sphi 0, %s40
      %s60 = sphi 0, %s60
      %s62 = sphi 0, %s60
      %s63 = sphi 0, %s62
      %s77 = sphi 0, %s63
      %s81 = sphi 0, %s81
      %s83 = sphi 0, %s81
      %s84 = sphi 0, %s83
      %s98 = sphi 0, %s84
      %s102 = sphi 0, %s102
      %s104 = sphi 0, %s102
      %s105 = sphi 0, %s104
      %s119 = sphi 0, %s105
      %s123 = sphi 0, %s123
      %s125 = sphi 0, %s123
      %s126 = sphi 0, %s125
      %s140 = sphi 0, %s126
      %s148 = sphi 0, %s150
      %s151 = sphi 0, %s148
      %s152 = sphi 0, %s151
      %s168 = sphi 0, %s152
    $region4: #{tpu_custom_call.1} parent=1 // loop_header_branch
      %17 = sbr.rel (%p15) target = $region8
    $region5: #{tpu_custom_call.1} parent=1 // loop_body
      %s19 = ssub.s32 %s14, 1
      %s20 = ssub.s32 %s14, 2
      %s27 = sadd.s32 1, %s22
      %p28 = scmp.ge.s32.totalorder %s27, 1
      %s29 = scalar_select %p28, 0, %s27
      %s30 = sadd.s32 1, %s21
      %s31 = scalar_select %p28, %s30, %s21
      %p32 = scmp.ge.s32.totalorder %s31, 2
      %s33 = scalar_select %p32, 0, %s31
      %s34 = ssub.s32 %s21, %s33
      %p35 = scmp.eq.s32.totalorder %s34, 0
      %s37 = sadd.s32 %s36, 1
      %s38 = scalar_select %p35, %s36, %s37
      %p41 = pneg %p35
      %p42 = scmp.eq.s32.totalorder %s14, 1
      %p43 = por %p41, %p42
      %p44 = scmp.ne.s32.totalorder %s36, %s39
      %p45 = scmp.eq.s32.totalorder %s14, 0
      %p46 = por %p44, %p45
      %p47 = scmp.ne.s32.totalorder %s36, %s39
      %p48 = scmp.eq.s32.totalorder %s19, 1
      %p49 = por %p47, %p48
      %p50 = scmp.ne.s32.totalorder %s39, %s40
      %p51 = scmp.eq.s32.totalorder %s19, 0
      %p52 = por %p50, %p51
      %p53 = scmp.ne.s32.totalorder %s39, %s40
      %p54 = scmp.eq.s32.totalorder %s20, 1
      %p55 = por %p53, %p54
      %p57 = scmp.ne.s32.totalorder %s40, %s56
      %p58 = scmp.eq.s32.totalorder %s20, 0
      %p59 = por %p57, %p58
      %s61 = sadd.s32 %s60, 1
      %p64 = scmp.eq.s32.totalorder %s14, 1
      %p65 = scmp.ne.s32.totalorder %s60, %s62
      %p66 = scmp.eq.s32.totalorder %s14, 0
      %p67 = por %p65, %p66
      %p68 = scmp.ne.s32.totalorder %s60, %s62
      %p69 = scmp.eq.s32.totalorder %s19, 1
      %p70 = por %p68, %p69
      %p71 = scmp.ne.s32.totalorder %s62, %s63
      %p72 = scmp.eq.s32.totalorder %s19, 0
      %p73 = por %p71, %p72
      %p74 = scmp.ne.s32.totalorder %s62, %s63
      %p75 = scmp.eq.s32.totalorder %s20, 1
      %p76 = por %p74, %p75
      %p78 = scmp.ne.s32.totalorder %s63, %s77
      %p79 = scmp.eq.s32.totalorder %s20, 0
      %p80 = por %p78, %p79
      %s82 = sadd.s32 %s81, 1
      %p85 = scmp.eq.s32.totalorder %s14, 1
      %p86 = scmp.ne.s32.totalorder %s81, %s83
      %p87 = scmp.eq.s32.totalorder %s14, 0
      %p88 = por %p86, %p87
      %p89 = scmp.ne.s32.totalorder %s81, %s83
      %p90 = scmp.eq.s32.totalorder %s19, 1
      %p91 = por %p89, %p90
      %p92 = scmp.ne.s32.totalorder %s83, %s84
      %p93 = scmp.eq.s32.totalorder %s19, 0
      %p94 = por %p92, %p93
      %p95 = scmp.ne.s32.totalorder %s83, %s84
      %p96 = scmp.eq.s32.totalorder %s20, 1
      %p97 = por %p95, %p96
      %p99 = scmp.ne.s32.totalorder %s84, %s98
      %p100 = scmp.eq.s32.totalorder %s20, 0
      %p101 = por %p99, %p100
      %s103 = sadd.s32 %s102, 1
      %p106 = scmp.eq.s32.totalorder %s14, 1
      %p107 = scmp.ne.s32.totalorder %s102, %s104
      %p108 = scmp.eq.s32.totalorder %s14, 0
      %p109 = por %p107, %p108
      %p110 = scmp.ne.s32.totalorder %s102, %s104
      %p111 = scmp.eq.s32.totalorder %s19, 1
      %p112 = por %p110, %p111
      %p113 = scmp.ne.s32.totalorder %s104, %s105
      %p114 = scmp.eq.s32.totalorder %s19, 0
      %p115 = por %p113, %p114
      %p116 = scmp.ne.s32.totalorder %s104, %s105
      %p117 = scmp.eq.s32.totalorder %s20, 1
      %p118 = por %p116, %p117
      %p120 = scmp.ne.s32.totalorder %s105, %s119
      %p121 = scmp.eq.s32.totalorder %s20, 0
      %p122 = por %p120, %p121
      %s124 = sadd.s32 %s123, 1
      %p127 = scmp.eq.s32.totalorder %s14, 1
      %p128 = scmp.ne.s32.totalorder %s123, %s125
      %p129 = scmp.eq.s32.totalorder %s14, 0
      %p130 = por %p128, %p129
      %p131 = scmp.ne.s32.totalorder %s123, %s125
      %p132 = scmp.eq.s32.totalorder %s19, 1
      %p133 = por %p131, %p132
      %p134 = scmp.ne.s32.totalorder %s125, %s126
      %p135 = scmp.eq.s32.totalorder %s19, 0
      %p136 = por %p134, %p135
      %p137 = scmp.ne.s32.totalorder %s125, %s126
      %p138 = scmp.eq.s32.totalorder %s20, 1
      %p139 = por %p137, %p138
      %p141 = scmp.ne.s32.totalorder %s126, %s140
      %p142 = scmp.eq.s32.totalorder %s20, 0
      %p143 = por %p141, %p142
      %s144 = ssub.s32 %s21, %s33
      %s145 = ssub.s32 %s22, %s29
      %s146 = sor.u32 %s144, %s145
      %p147 = scmp.eq.s32.totalorder %s146, 0
      %s149 = sadd.s32 %s148, 1
      %s150 = scalar_select %p147, %s148, %s149
      %p153 = pneg %p147
      %p154 = scmp.eq.s32.totalorder %s14, 1
      %p155 = por %p153, %p154
      %p156 = scmp.ne.s32.totalorder %s148, %s151
      %p157 = scmp.eq.s32.totalorder %s14, 0
      %p158 = por %p156, %p157
      %p159 = scmp.ne.s32.totalorder %s148, %s151
      %p160 = scmp.eq.s32.totalorder %s19, 1
      %p161 = por %p159, %p160
      %p162 = scmp.ne.s32.totalorder %s151, %s152
      %p163 = scmp.eq.s32.totalorder %s19, 0
      %p164 = por %p162, %p163
      %p165 = scmp.ne.s32.totalorder %s151, %s152
      %p166 = scmp.eq.s32.totalorder %s20, 1
      %p167 = por %p165, %p166
      %p169 = scmp.ne.s32.totalorder %s152, %s168
      %p170 = scmp.eq.s32.totalorder %s20, 0
      %p171 = por %p169, %p170
      %p172 = scmp.le.s32.totalorder 1, %s14
      %p173 = scmp.lt.s32.totalorder %s14, 3
      %p174 = pnand %p172, %p173
      %p175 = pneg %p174
      // Predicated region
      $region9: #{tpu_custom_call.1} parent=5 // pred_check
        _
      $region10: #{tpu_custom_call.1} parent=5 // pred_check_branch
        %177 = sbr.rel (%p174) target = $region12
      $region11: #{tpu_custom_call.1} parent=5 // pred_region
        %s178 = ssub.s32 %s14, 1
        // Predicated region
        $region13: #{tpu_custom_call.1} parent=11 // pred_check
          %p179 = pneg %p73
        $region14: #{tpu_custom_call.1} parent=11 // pred_check_branch
          %181 = sbr.rel (%p179) target = $region16
        $region15: #{tpu_custom_call.1} parent=11 // pred_region
          _
        $region16: #{tpu_custom_call.1} parent=11 // pred_fallthru
          _
        // Predicated region
        $region17: #{tpu_custom_call.1} parent=11 // pred_check
          %p182 = pneg %p94
        $region18: #{tpu_custom_call.1} parent=11 // pred_check_branch
          %184 = sbr.rel (%p182) target = $region20
        $region19: #{tpu_custom_call.1} parent=11 // pred_region
          _
        $region20: #{tpu_custom_call.1} parent=11 // pred_fallthru
          _
        // Predicated region
        $region21: #{tpu_custom_call.1} parent=11 // pred_check
          %p185 = pneg %p115
        $region22: #{tpu_custom_call.1} parent=11 // pred_check_branch
          %187 = sbr.rel (%p185) target = $region24
        $region23: #{tpu_custom_call.1} parent=11 // pred_region
          _
        $region24: #{tpu_custom_call.1} parent=11 // pred_fallthru
          _
        // Predicated region
        $region25: #{tpu_custom_call.1} parent=11 // pred_check
          %p188 = pneg %p136
        $region26: #{tpu_custom_call.1} parent=11 // pred_check_branch
          %190 = sbr.rel (%p188) target = $region28
        $region27: #{tpu_custom_call.1} parent=11 // pred_region
          _
        $region28: #{tpu_custom_call.1} parent=11 // pred_fallthru
          _
      $region12: #{tpu_custom_call.1} parent=5 // pred_fallthru
        _
      %p191 = scmp.lt.s32.totalorder %s14, 2
      // Predicated region
      $region29: #{tpu_custom_call.1} parent=5 // pred_check
        %p192 = pneg %p191
      $region30: #{tpu_custom_call.1} parent=5 // pred_check_branch
        %194 = sbr.rel (%p192) target = $region32
      $region31: #{tpu_custom_call.1} parent=5 // pred_region
        // Predicated region
        $region33: #{tpu_custom_call.1} parent=31 // pred_check
          %p195 = pneg %p46
        $region34: #{tpu_custom_call.1} parent=31 // pred_check_branch
          %197 = sbr.rel (%p195) target = $region36
        $region35: #{tpu_custom_call.1} parent=31 // pred_region
          %p198 = scmp.lt.s32.totalorder %s21, 1
          %s199 = scalar_select %p198, %s21, 1
          %s200 = smul.addr %s199, 54
          %s201 = smul.addr %s200, 8
          %s202 = scalar_lea.vmem %s0, %s201
        $region36: #{tpu_custom_call.1} parent=31 // pred_fallthru
          _
      $region32: #{tpu_custom_call.1} parent=5 // pred_fallthru
        _
      %p203 = scmp.le.s32.totalorder 1, %s14
      %p204 = scmp.lt.s32.totalorder %s14, 3
      %p205 = pnand %p203, %p204
      %p206 = pneg %p205
      // Predicated region
      $region37: #{tpu_custom_call.1} parent=5 // pred_check
        _
      $region38: #{tpu_custom_call.1} parent=5 // pred_check_branch
        %208 = sbr.rel (%p205) target = $region40
      $region39: #{tpu_custom_call.1} parent=5 // pred_region
        %s209 = ssub.s32 %s14, 1
        %p210 = scmp.lt.s32.totalorder %s23, 1
        %s211 = scalar_select %p210, %s23, 1
        %s212 = smul.addr %s211, 54
        %s213 = smul.addr %s212, 8
        %s214 = scalar_lea.vmem %s0, %s213
        %p215 = pneg %p52
        %p216 = pneg %p49
        %p217 = pneg %p73
        %p218 = pneg %p70
        %p219 = pneg %p94
        %p220 = pneg %p91
        %p221 = pneg %p115
        %p222 = pneg %p112
        %p223 = pneg %p136
        %p224 = pneg %p133
        %p225 = pneg %p164
        %p226 = pneg %p161
        %s227 = sand.u32 %s151, 1
        %s228 = scalar_lea.sflag [#allocation3], %s227
        %s229 = sand.u32 %s151, 1
        %s230 = smul.addr %s229, 256
        %s231 = scalar_lea.vmem [#allocation2], %s230
        %p232 = scmp.lt.s32.totalorder %s23, 1
        %s233 = scalar_select %p232, %s23, 1
        %s234 = smul.addr %s233, 54
        %s235 = smul.addr %s234, 8
        %s236 = scalar_lea.vmem %s0, %s235
        %s237 = smul.u32 16, %s24
        %s239 = smul.u32 %s24, 16
        %s240 = smul.u32 %s239, 24
        %s241 = scalar_lea.vmem %s236, %s240
        %v242 = vld [vmem:[%s241] sm:$0xff]
        %v243 = vld [vmem:[%s241 + $0x8] sm:$0xff]
        %v244 = vld [vmem:[%s241 + $0x18] sm:$0xff]
        %v245 = vld [vmem:[%s241 + $0x20] sm:$0xff]
        %v246 = vld [vmem:[%s241 + $0x30] sm:$0xff]
        %v247 = vld [vmem:[%s241 + $0x38] sm:$0xff]
        %v248 = vld [vmem:[%s241 + $0x48] sm:$0xff]
        %v249 = vld [vmem:[%s241 + $0x50] sm:$0xff]
        %v250 = vld [vmem:[%s241 + $0x60] sm:$0xff]
        %v251 = vld [vmem:[%s241 + $0x68] sm:$0xff]
        %v252 = vld [vmem:[%s241 + $0x78] sm:$0xff]
        %v253 = vld [vmem:[%s241 + $0x80] sm:$0xff]
        %v254 = vld [vmem:[%s241 + $0x90] sm:$0xff]
        %v255 = vld [vmem:[%s241 + $0x98] sm:$0xff]
        %v256 = vld [vmem:[%s241 + $0xa8] sm:$0xff]
        %v257 = vld [vmem:[%s241 + $0xb0] sm:$0xff]
        %v258 = vld [vmem:[%s241 + $0xc0] sm:$0xff]
        %v259 = vld [vmem:[%s241 + $0xc8] sm:$0xff]
        %v260 = vld [vmem:[%s241 + $0xd8] sm:$0xff]
        %v261 = vld [vmem:[%s241 + $0xe0] sm:$0xff]
        %v262 = vld [vmem:[%s241 + $0xf0] sm:$0xff]
        %v263 = vld [vmem:[%s241 + $0xf8] sm:$0xff]
        %v264 = vld [vmem:[%s241 + $0x108] sm:$0xff]
        %v265 = vld [vmem:[%s241 + $0x110] sm:$0xff]
        %v266 = vld [vmem:[%s241 + $0x120] sm:$0xff]
        %v267 = vld [vmem:[%s241 + $0x128] sm:$0xff]
        %v268 = vld [vmem:[%s241 + $0x138] sm:$0xff]
        %v269 = vld [vmem:[%s241 + $0x140] sm:$0xff]
        %v270 = vld [vmem:[%s241 + $0x150] sm:$0xff]
        %v271 = vld [vmem:[%s241 + $0x158] sm:$0xff]
        %v272 = vld [vmem:[%s241 + $0x168] sm:$0xff]
        %v273 = vld [vmem:[%s241 + $0x170] sm:$0xff]
        %v274 = vld [vmem:[%s1] sm:$0x1]
        %v275 = vlaneseq
        %v276 = vshrl.u32 %v275, 7
        %v277 = vsub.s32 0, %v276
        %v278 = vrot.slane %v274, %v277
        %v279 = vmul.f32 %v242, %v278
        %v280 = vmul.f32 %v243, %v278
        %v281 = vmul.f32 %v244, %v278
        %v282 = vmul.f32 %v245, %v278
        %v283 = vmul.f32 %v246, %v278
        %v284 = vmul.f32 %v247, %v278
        %v285 = vmul.f32 %v248, %v278
        %v286 = vmul.f32 %v249, %v278
        %v287 = vmul.f32 %v250, %v278
        %v288 = vmul.f32 %v251, %v278
        %v289 = vmul.f32 %v252, %v278
        %v290 = vmul.f32 %v253, %v278
        %v291 = vmul.f32 %v254, %v278
        %v292 = vmul.f32 %v255, %v278
        %v293 = vmul.f32 %v256, %v278
        %v294 = vmul.f32 %v257, %v278
        %v295 = vmul.f32 %v258, %v278
        %v296 = vmul.f32 %v259, %v278
        %v297 = vmul.f32 %v260, %v278
        %v298 = vmul.f32 %v261, %v278
        %v299 = vmul.f32 %v262, %v278
        %v300 = vmul.f32 %v263, %v278
        %v301 = vmul.f32 %v264, %v278
        %v302 = vmul.f32 %v265, %v278
        %v303 = vmul.f32 %v266, %v278
        %v304 = vmul.f32 %v267, %v278
        %v305 = vmul.f32 %v268, %v278
        %v306 = vmul.f32 %v269, %v278
        %v307 = vmul.f32 %v270, %v278
        %v308 = vmul.f32 %v271, %v278
        %v309 = vmul.f32 %v272, %v278
        %v310 = vmul.f32 %v273, %v278
        %v311 = vadd.f32 %v279, 0.0
        %v312 = vadd.f32 %v280, 0.0
        %v313 = vadd.f32 %v281, 0.0
        %v314 = vadd.f32 %v282, 0.0
        %v315 = vadd.f32 %v283, 0.0
        %v316 = vadd.f32 %v284, 0.0
        %v317 = vadd.f32 %v285, 0.0
        %v318 = vadd.f32 %v286, 0.0
        %v319 = vadd.f32 %v287, 0.0
        %v320 = vadd.f32 %v288, 0.0
        %v321 = vadd.f32 %v289, 0.0
        %v322 = vadd.f32 %v290, 0.0
        %v323 = vadd.f32 %v291, 0.0
        %v324 = vadd.f32 %v292, 0.0
        %v325 = vadd.f32 %v293, 0.0
        %v326 = vadd.f32 %v294, 0.0
        %v327 = vadd.f32 %v295, 0.0
        %v328 = vadd.f32 %v296, 0.0
        %v329 = vadd.f32 %v297, 0.0
        %v330 = vadd.f32 %v298, 0.0
        %v331 = vadd.f32 %v299, 0.0
        %v332 = vadd.f32 %v300, 0.0
        %v333 = vadd.f32 %v301, 0.0
        %v334 = vadd.f32 %v302, 0.0
        %v335 = vadd.f32 %v303, 0.0
        %v336 = vadd.f32 %v304, 0.0
        %v337 = vadd.f32 %v305, 0.0
        %v338 = vadd.f32 %v306, 0.0
        %v339 = vadd.f32 %v307, 0.0
        %v340 = vadd.f32 %v308, 0.0
        %v341 = vadd.f32 %v309, 0.0
        %v342 = vadd.f32 %v310, 0.0
        %v343 = vld [vmem:[%s241 + $0x1] sm:$0xff]
        %v344 = vld [vmem:[%s241 + $0x9] sm:$0xff]
        %v345 = vld [vmem:[%s241 + $0x19] sm:$0xff]
        %v346 = vld [vmem:[%s241 + $0x21] sm:$0xff]
        %v347 = vld [vmem:[%s241 + $0x31] sm:$0xff]
        %v348 = vld [vmem:[%s241 + $0x39] sm:$0xff]
        %v349 = vld [vmem:[%s241 + $0x49] sm:$0xff]
        %v350 = vld [vmem:[%s241 + $0x51] sm:$0xff]
        %v351 = vld [vmem:[%s241 + $0x61] sm:$0xff]
        %v352 = vld [vmem:[%s241 + $0x69] sm:$0xff]
        %v353 = vld [vmem:[%s241 + $0x79] sm:$0xff]
        %v354 = vld [vmem:[%s241 + $0x81] sm:$0xff]
        %v355 = vld [vmem:[%s241 + $0x91] sm:$0xff]
        %v356 = vld [vmem:[%s241 + $0x99] sm:$0xff]
        %v357 = vld [vmem:[%s241 + $0xa9] sm:$0xff]
        %v358 = vld [vmem:[%s241 + $0xb1] sm:$0xff]
        %v359 = vld [vmem:[%s241 + $0xc1] sm:$0xff]
        %v360 = vld [vmem:[%s241 + $0xc9] sm:$0xff]
        %v361 = vld [vmem:[%s241 + $0xd9] sm:$0xff]
        %v362 = vld [vmem:[%s241 + $0xe1] sm:$0xff]
        %v363 = vld [vmem:[%s241 + $0xf1] sm:$0xff]
        %v364 = vld [vmem:[%s241 + $0xf9] sm:$0xff]
        %v365 = vld [vmem:[%s241 + $0x109] sm:$0xff]
        %v366 = vld [vmem:[%s241 + $0x111] sm:$0xff]
        %v367 = vld [vmem:[%s241 + $0x121] sm:$0xff]
        %v368 = vld [vmem:[%s241 + $0x129] sm:$0xff]
        %v369 = vld [vmem:[%s241 + $0x139] sm:$0xff]
        %v370 = vld [vmem:[%s241 + $0x141] sm:$0xff]
        %v371 = vld [vmem:[%s241 + $0x151] sm:$0xff]
        %v372 = vld [vmem:[%s241 + $0x159] sm:$0xff]
        %v373 = vld [vmem:[%s241 + $0x169] sm:$0xff]
        %v374 = vld [vmem:[%s241 + $0x171] sm:$0xff]
        %v375 = vld [vmem:[%s1 + $0x1] sm:$0x1]
        %v376 = vlaneseq
        %v377 = vshrl.u32 %v376, 7
        %v378 = vsub.s32 0, %v377
        %v379 = vrot.slane %v375, %v378
        %v380 = vmul.f32 %v343, %v379
        %v381 = vmul.f32 %v344, %v379
        %v382 = vmul.f32 %v345, %v379
        %v383 = vmul.f32 %v346, %v379
        %v384 = vmul.f32 %v347, %v379
        %v385 = vmul.f32 %v348, %v379
        %v386 = vmul.f32 %v349, %v379
        %v387 = vmul.f32 %v350, %v379
        %v388 = vmul.f32 %v351, %v379
        %v389 = vmul.f32 %v352, %v379
        %v390 = vmul.f32 %v353, %v379
        %v391 = vmul.f32 %v354, %v379
        %v392 = vmul.f32 %v355, %v379
        %v393 = vmul.f32 %v356, %v379
        %v394 = vmul.f32 %v357, %v379
        %v395 = vmul.f32 %v358, %v379
        %v396 = vmul.f32 %v359, %v379
        %v397 = vmul.f32 %v360, %v379
        %v398 = vmul.f32 %v361, %v379
        %v399 = vmul.f32 %v362, %v379
        %v400 = vmul.f32 %v363, %v379
        %v401 = vmul.f32 %v364, %v379
        %v402 = vmul.f32 %v365, %v379
        %v403 = vmul.f32 %v366, %v379
        %v404 = vmul.f32 %v367, %v379
        %v405 = vmul.f32 %v368, %v379
        %v406 = vmul.f32 %v369, %v379
        %v407 = vmul.f32 %v370, %v379
        %v408 = vmul.f32 %v371, %v379
        %v409 = vmul.f32 %v372, %v379
        %v410 = vmul.f32 %v373, %v379
        %v411 = vmul.f32 %v374, %v379
        %v412 = vadd.f32 %v311, %v380
        %v413 = vadd.f32 %v312, %v381
        %v414 = vadd.f32 %v313, %v382
        %v415 = vadd.f32 %v314, %v383
        %v416 = vadd.f32 %v315, %v384
        %v417 = vadd.f32 %v316, %v385
        %v418 = vadd.f32 %v317, %v386
        %v419 = vadd.f32 %v318, %v387
        %v420 = vadd.f32 %v319, %v388
        %v421 = vadd.f32 %v320, %v389
        %v422 = vadd.f32 %v321, %v390
        %v423 = vadd.f32 %v322, %v391
        %v424 = vadd.f32 %v323, %v392
        %v425 = vadd.f32 %v324, %v393
        %v426 = vadd.f32 %v325, %v394
        %v427 = vadd.f32 %v326, %v395
        %v428 = vadd.f32 %v327, %v396
        %v429 = vadd.f32 %v328, %v397
        %v430 = vadd.f32 %v329, %v398
        %v431 = vadd.f32 %v330, %v399
        %v432 = vadd.f32 %v331, %v400
        %v433 = vadd.f32 %v332, %v401
        %v434 = vadd.f32 %v333, %v402
        %v435 = vadd.f32 %v334, %v403
        %v436 = vadd.f32 %v335, %v404
        %v437 = vadd.f32 %v336, %v405
        %v438 = vadd.f32 %v337, %v406
        %v439 = vadd.f32 %v338, %v407
        %v440 = vadd.f32 %v339, %v408
        %v441 = vadd.f32 %v340, %v409
        %v442 = vadd.f32 %v341, %v410
        %v443 = vadd.f32 %v342, %v411
        %v444 = vld [vmem:[%s241 + $0x2] sm:$0xff]
        %v445 = vld [vmem:[%s241 + $0xa] sm:$0xff]
        %v446 = vld [vmem:[%s241 + $0x1a] sm:$0xff]
        %v447 = vld [vmem:[%s241 + $0x22] sm:$0xff]
        %v448 = vld [vmem:[%s241 + $0x32] sm:$0xff]
        %v449 = vld [vmem:[%s241 + $0x3a] sm:$0xff]
        %v450 = vld [vmem:[%s241 + $0x4a] sm:$0xff]
        %v451 = vld [vmem:[%s241 + $0x52] sm:$0xff]
        %v452 = vld [vmem:[%s241 + $0x62] sm:$0xff]
        %v453 = vld [vmem:[%s241 + $0x6a] sm:$0xff]
        %v454 = vld [vmem:[%s241 + $0x7a] sm:$0xff]
        %v455 = vld [vmem:[%s241 + $0x82] sm:$0xff]
        %v456 = vld [vmem:[%s241 + $0x92] sm:$0xff]
        %v457 = vld [vmem:[%s241 + $0x9a] sm:$0xff]
        %v458 = vld [vmem:[%s241 + $0xaa] sm:$0xff]
        %v459 = vld [vmem:[%s241 + $0xb2] sm:$0xff]
        %v460 = vld [vmem:[%s241 + $0xc2] sm:$0xff]
        %v461 = vld [vmem:[%s241 + $0xca] sm:$0xff]
        %v462 = vld [vmem:[%s241 + $0xda] sm:$0xff]
        %v463 = vld [vmem:[%s241 + $0xe2] sm:$0xff]
        %v464 = vld [vmem:[%s241 + $0xf2] sm:$0xff]
        %v465 = vld [vmem:[%s241 + $0xfa] sm:$0xff]
        %v466 = vld [vmem:[%s241 + $0x10a] sm:$0xff]
        %v467 = vld [vmem:[%s241 + $0x112] sm:$0xff]
        %v468 = vld [vmem:[%s241 + $0x122] sm:$0xff]
        %v469 = vld [vmem:[%s241 + $0x12a] sm:$0xff]
        %v470 = vld [vmem:[%s241 + $0x13a] sm:$0xff]
        %v471 = vld [vmem:[%s241 + $0x142] sm:$0xff]
        %v472 = vld [vmem:[%s241 + $0x152] sm:$0xff]
        %v473 = vld [vmem:[%s241 + $0x15a] sm:$0xff]
        %v474 = vld [vmem:[%s241 + $0x16a] sm:$0xff]
        %v475 = vld [vmem:[%s241 + $0x172] sm:$0xff]
        %v476 = vld [vmem:[%s1 + $0x2] sm:$0x1]
        %v477 = vlaneseq
        %v478 = vshrl.u32 %v477, 7
        %v479 = vsub.s32 0, %v478
        %v480 = vrot.slane %v476, %v479
        %v481 = vmul.f32 %v444, %v480
        %v482 = vmul.f32 %v445, %v480
        %v483 = vmul.f32 %v446, %v480
        %v484 = vmul.f32 %v447, %v480
        %v485 = vmul.f32 %v448, %v480
        %v486 = vmul.f32 %v449, %v480
        %v487 = vmul.f32 %v450, %v480
        %v488 = vmul.f32 %v451, %v480
        %v489 = vmul.f32 %v452, %v480
        %v490 = vmul.f32 %v453, %v480
        %v491 = vmul.f32 %v454, %v480
        %v492 = vmul.f32 %v455, %v480
        %v493 = vmul.f32 %v456, %v480
        %v494 = vmul.f32 %v457, %v480
        %v495 = vmul.f32 %v458, %v480
        %v496 = vmul.f32 %v459, %v480
        %v497 = vmul.f32 %v460, %v480
        %v498 = vmul.f32 %v461, %v480
        %v499 = vmul.f32 %v462, %v480
        %v500 = vmul.f32 %v463, %v480
        %v501 = vmul.f32 %v464, %v480
        %v502 = vmul.f32 %v465, %v480
        %v503 = vmul.f32 %v466, %v480
        %v504 = vmul.f32 %v467, %v480
        %v505 = vmul.f32 %v468, %v480
        %v506 = vmul.f32 %v469, %v480
        %v507 = vmul.f32 %v470, %v480
        %v508 = vmul.f32 %v471, %v480
        %v509 = vmul.f32 %v472, %v480
        %v510 = vmul.f32 %v473, %v480
        %v511 = vmul.f32 %v474, %v480
        %v512 = vmul.f32 %v475, %v480
        %v513 = vadd.f32 %v412, %v481
        %v514 = vadd.f32 %v413, %v482
        %v515 = vadd.f32 %v414, %v483
        %v516 = vadd.f32 %v415, %v484
        %v517 = vadd.f32 %v416, %v485
        %v518 = vadd.f32 %v417, %v486
        %v519 = vadd.f32 %v418, %v487
        %v520 = vadd.f32 %v419, %v488
        %v521 = vadd.f32 %v420, %v489
        %v522 = vadd.f32 %v421, %v490
        %v523 = vadd.f32 %v422, %v491
        %v524 = vadd.f32 %v423, %v492
        %v525 = vadd.f32 %v424, %v493
        %v526 = vadd.f32 %v425, %v494
        %v527 = vadd.f32 %v426, %v495
        %v528 = vadd.f32 %v427, %v496
        %v529 = vadd.f32 %v428, %v497
        %v530 = vadd.f32 %v429, %v498
        %v531 = vadd.f32 %v430, %v499
        %v532 = vadd.f32 %v431, %v500
        %v533 = vadd.f32 %v432, %v501
        %v534 = vadd.f32 %v433, %v502
        %v535 = vadd.f32 %v434, %v503
        %v536 = vadd.f32 %v435, %v504
        %v537 = vadd.f32 %v436, %v505
        %v538 = vadd.f32 %v437, %v506
        %v539 = vadd.f32 %v438, %v507
        %v540 = vadd.f32 %v439, %v508
        %v541 = vadd.f32 %v440, %v509
        %v542 = vadd.f32 %v441, %v510
        %v543 = vadd.f32 %v442, %v511
        %v544 = vadd.f32 %v443, %v512
        %s545 = sadd.s32 %s239, 1
        %s546 = smul.u32 %s545, 24
        %s547 = scalar_lea.vmem %s236, %s546
        %v548 = vld [vmem:[%s547] sm:$0xff]
        %v549 = vld [vmem:[%s547 + $0x8] sm:$0xff]
        %v550 = vld [vmem:[%s547 + $0x18] sm:$0xff]
        %v551 = vld [vmem:[%s547 + $0x20] sm:$0xff]
        %v552 = vld [vmem:[%s547 + $0x30] sm:$0xff]
        %v553 = vld [vmem:[%s547 + $0x38] sm:$0xff]
        %v554 = vld [vmem:[%s547 + $0x48] sm:$0xff]
        %v555 = vld [vmem:[%s547 + $0x50] sm:$0xff]
        %v556 = vld [vmem:[%s547 + $0x60] sm:$0xff]
        %v557 = vld [vmem:[%s547 + $0x68] sm:$0xff]
        %v558 = vld [vmem:[%s547 + $0x78] sm:$0xff]
        %v559 = vld [vmem:[%s547 + $0x80] sm:$0xff]
        %v560 = vld [vmem:[%s547 + $0x90] sm:$0xff]
        %v561 = vld [vmem:[%s547 + $0x98] sm:$0xff]
        %v562 = vld [vmem:[%s547 + $0xa8] sm:$0xff]
        %v563 = vld [vmem:[%s547 + $0xb0] sm:$0xff]
        %v564 = vld [vmem:[%s547 + $0xc0] sm:$0xff]
        %v565 = vld [vmem:[%s547 + $0xc8] sm:$0xff]
        %v566 = vld [vmem:[%s547 + $0xd8] sm:$0xff]
        %v567 = vld [vmem:[%s547 + $0xe0] sm:$0xff]
        %v568 = vld [vmem:[%s547 + $0xf0] sm:$0xff]
        %v569 = vld [vmem:[%s547 + $0xf8] sm:$0xff]
        %v570 = vld [vmem:[%s547 + $0x108] sm:$0xff]
        %v571 = vld [vmem:[%s547 + $0x110] sm:$0xff]
        %v572 = vld [vmem:[%s547 + $0x120] sm:$0xff]
        %v573 = vld [vmem:[%s547 + $0x128] sm:$0xff]
        %v574 = vld [vmem:[%s547 + $0x138] sm:$0xff]
        %v575 = vld [vmem:[%s547 + $0x140] sm:$0xff]
        %v576 = vld [vmem:[%s547 + $0x150] sm:$0xff]
        %v577 = vld [vmem:[%s547 + $0x158] sm:$0xff]
        %v578 = vld [vmem:[%s547 + $0x168] sm:$0xff]
        %v579 = vld [vmem:[%s547 + $0x170] sm:$0xff]
        %s580 = scalar_lea.vmem %s1, 4
        %v581 = vld [vmem:[%s580] sm:$0x1]
        %v582 = vlaneseq
        %v583 = vshrl.u32 %v582, 7
        %v584 = vsub.s32 0, %v583
        %v585 = vrot.slane %v581, %v584
        %v586 = vmul.f32 %v548, %v585
        %v587 = vmul.f32 %v549, %v585
        %v588 = vmul.f32 %v550, %v585
        %v589 = vmul.f32 %v551, %v585
        %v590 = vmul.f32 %v552, %v585
        %v591 = vmul.f32 %v553, %v585
        %v592 = vmul.f32 %v554, %v585
        %v593 = vmul.f32 %v555, %v585
        %v594 = vmul.f32 %v556, %v585
        %v595 = vmul.f32 %v557, %v585
        %v596 = vmul.f32 %v558, %v585
        %v597 = vmul.f32 %v559, %v585
        %v598 = vmul.f32 %v560, %v585
        %v599 = vmul.f32 %v561, %v585
        %v600 = vmul.f32 %v562, %v585
        %v601 = vmul.f32 %v563, %v585
        %v602 = vmul.f32 %v564, %v585
        %v603 = vmul.f32 %v565, %v585
        %v604 = vmul.f32 %v566, %v585
        %v605 = vmul.f32 %v567, %v585
        %v606 = vmul.f32 %v568, %v585
        %v607 = vmul.f32 %v569, %v585
        %v608 = vmul.f32 %v570, %v585
        %v609 = vmul.f32 %v571, %v585
        %v610 = vmul.f32 %v572, %v585
        %v611 = vmul.f32 %v573, %v585
        %v612 = vmul.f32 %v574, %v585
        %v613 = vmul.f32 %v575, %v585
        %v614 = vmul.f32 %v576, %v585
        %v615 = vmul.f32 %v577, %v585
        %v616 = vmul.f32 %v578, %v585
        %v617 = vmul.f32 %v579, %v585
        %v618 = vadd.f32 %v513, %v586
        %v619 = vadd.f32 %v514, %v587
        %v620 = vadd.f32 %v515, %v588
        %v621 = vadd.f32 %v516, %v589
        %v622 = vadd.f32 %v517, %v590
        %v623 = vadd.f32 %v518, %v591
        %v624 = vadd.f32 %v519, %v592
        %v625 = vadd.f32 %v520, %v593
        %v626 = vadd.f32 %v521, %v594
        %v627 = vadd.f32 %v522, %v595
        %v628 = vadd.f32 %v523, %v596
        %v629 = vadd.f32 %v524, %v597
        %v630 = vadd.f32 %v525, %v598
        %v631 = vadd.f32 %v526, %v599
        %v632 = vadd.f32 %v527, %v600
        %v633 = vadd.f32 %v528, %v601
        %v634 = vadd.f32 %v529, %v602
        %v635 = vadd.f32 %v530, %v603
        %v636 = vadd.f32 %v531, %v604
        %v637 = vadd.f32 %v532, %v605
        %v638 = vadd.f32 %v533, %v606
        %v639 = vadd.f32 %v534, %v607
        %v640 = vadd.f32 %v535, %v608
        %v641 = vadd.f32 %v536, %v609
        %v642 = vadd.f32 %v537, %v610
        %v643 = vadd.f32 %v538, %v611
        %v644 = vadd.f32 %v539, %v612
        %v645 = vadd.f32 %v540, %v613
        %v646 = vadd.f32 %v541, %v614
        %v647 = vadd.f32 %v542, %v615
        %v648 = vadd.f32 %v543, %v616
        %v649 = vadd.f32 %v544, %v617
        %v650 = vld [vmem:[%s547 + $0x1] sm:$0xff]
        %v651 = vld [vmem:[%s547 + $0x9] sm:$0xff]
        %v652 = vld [vmem:[%s547 + $0x19] sm:$0xff]
        %v653 = vld [vmem:[%s547 + $0x21] sm:$0xff]
        %v654 = vld [vmem:[%s547 + $0x31] sm:$0xff]
        %v655 = vld [vmem:[%s547 + $0x39] sm:$0xff]
        %v656 = vld [vmem:[%s547 + $0x49] sm:$0xff]
        %v657 = vld [vmem:[%s547 + $0x51] sm:$0xff]
        %v658 = vld [vmem:[%s547 + $0x61] sm:$0xff]
        %v659 = vld [vmem:[%s547 + $0x69] sm:$0xff]
        %v660 = vld [vmem:[%s547 + $0x79] sm:$0xff]
        %v661 = vld [vmem:[%s547 + $0x81] sm:$0xff]
        %v662 = vld [vmem:[%s547 + $0x91] sm:$0xff]
        %v663 = vld [vmem:[%s547 + $0x99] sm:$0xff]
        %v664 = vld [vmem:[%s547 + $0xa9] sm:$0xff]
        %v665 = vld [vmem:[%s547 + $0xb1] sm:$0xff]
        %v666 = vld [vmem:[%s547 + $0xc1] sm:$0xff]
        %v667 = vld [vmem:[%s547 + $0xc9] sm:$0xff]
        %v668 = vld [vmem:[%s547 + $0xd9] sm:$0xff]
        %v669 = vld [vmem:[%s547 + $0xe1] sm:$0xff]
        %v670 = vld [vmem:[%s547 + $0xf1] sm:$0xff]
        %v671 = vld [vmem:[%s547 + $0xf9] sm:$0xff]
        %v672 = vld [vmem:[%s547 + $0x109] sm:$0xff]
        %v673 = vld [vmem:[%s547 + $0x111] sm:$0xff]
        %v674 = vld [vmem:[%s547 + $0x121] sm:$0xff]
        %v675 = vld [vmem:[%s547 + $0x129] sm:$0xff]
        %v676 = vld [vmem:[%s547 + $0x139] sm:$0xff]
        %v677 = vld [vmem:[%s547 + $0x141] sm:$0xff]
        %v678 = vld [vmem:[%s547 + $0x151] sm:$0xff]
        %v679 = vld [vmem:[%s547 + $0x159] sm:$0xff]
        %v680 = vld [vmem:[%s547 + $0x169] sm:$0xff]
        %v681 = vld [vmem:[%s547 + $0x171] sm:$0xff]
        %v682 = vld [vmem:[%s580 + $0x1] sm:$0x1]
        %v683 = vlaneseq
        %v684 = vshrl.u32 %v683, 7
        %v685 = vsub.s32 0, %v684
        %v686 = vrot.slane %v682, %v685
        %v687 = vmul.f32 %v650, %v686
        %v688 = vmul.f32 %v651, %v686
        %v689 = vmul.f32 %v652, %v686
        %v690 = vmul.f32 %v653, %v686
        %v691 = vmul.f32 %v654, %v686
        %v692 = vmul.f32 %v655, %v686
        %v693 = vmul.f32 %v656, %v686
        %v694 = vmul.f32 %v657, %v686
        %v695 = vmul.f32 %v658, %v686
        %v696 = vmul.f32 %v659, %v686
        %v697 = vmul.f32 %v660, %v686
        %v698 = vmul.f32 %v661, %v686
        %v699 = vmul.f32 %v662, %v686
        %v700 = vmul.f32 %v663, %v686
        %v701 = vmul.f32 %v664, %v686
        %v702 = vmul.f32 %v665, %v686
        %v703 = vmul.f32 %v666, %v686
        %v704 = vmul.f32 %v667, %v686
        %v705 = vmul.f32 %v668, %v686
        %v706 = vmul.f32 %v669, %v686
        %v707 = vmul.f32 %v670, %v686
        %v708 = vmul.f32 %v671, %v686
        %v709 = vmul.f32 %v672, %v686
        %v710 = vmul.f32 %v673, %v686
        %v711 = vmul.f32 %v674, %v686
        %v712 = vmul.f32 %v675, %v686
        %v713 = vmul.f32 %v676, %v686
        %v714 = vmul.f32 %v677, %v686
        %v715 = vmul.f32 %v678, %v686
        %v716 = vmul.f32 %v679, %v686
        %v717 = vmul.f32 %v680, %v686
        %v718 = vmul.f32 %v681, %v686
        %v719 = vadd.f32 %v618, %v687
        %v720 = vadd.f32 %v619, %v688
        %v721 = vadd.f32 %v620, %v689
        %v722 = vadd.f32 %v621, %v690
        %v723 = vadd.f32 %v622, %v691
        %v724 = vadd.f32 %v623, %v692
        %v725 = vadd.f32 %v624, %v693
        %v726 = vadd.f32 %v625, %v694
        %v727 = vadd.f32 %v626, %v695
        %v728 = vadd.f32 %v627, %v696
        %v729 = vadd.f32 %v628, %v697
        %v730 = vadd.f32 %v629, %v698
        %v731 = vadd.f32 %v630, %v699
        %v732 = vadd.f32 %v631, %v700
        %v733 = vadd.f32 %v632, %v701
        %v734 = vadd.f32 %v633, %v702
        %v735 = vadd.f32 %v634, %v703
        %v736 = vadd.f32 %v635, %v704
        %v737 = vadd.f32 %v636, %v705
        %v738 = vadd.f32 %v637, %v706
        %v739 = vadd.f32 %v638, %v707
        %v740 = vadd.f32 %v639, %v708
        %v741 = vadd.f32 %v640, %v709
        %v742 = vadd.f32 %v641, %v710
        %v743 = vadd.f32 %v642, %v711
        %v744 = vadd.f32 %v643, %v712
        %v745 = vadd.f32 %v644, %v713
        %v746 = vadd.f32 %v645, %v714
        %v747 = vadd.f32 %v646, %v715
        %v748 = vadd.f32 %v647, %v716
        %v749 = vadd.f32 %v648, %v717
        %v750 = vadd.f32 %v649, %v718
        %v751 = vld [vmem:[%s547 + $0x2] sm:$0xff]
        %v752 = vld [vmem:[%s547 + $0xa] sm:$0xff]
        %v753 = vld [vmem:[%s547 + $0x1a] sm:$0xff]
        %v754 = vld [vmem:[%s547 + $0x22] sm:$0xff]
        %v755 = vld [vmem:[%s547 + $0x32] sm:$0xff]
        %v756 = vld [vmem:[%s547 + $0x3a] sm:$0xff]
        %v757 = vld [vmem:[%s547 + $0x4a] sm:$0xff]
        %v758 = vld [vmem:[%s547 + $0x52] sm:$0xff]
        %v759 = vld [vmem:[%s547 + $0x62] sm:$0xff]
        %v760 = vld [vmem:[%s547 + $0x6a] sm:$0xff]
        %v761 = vld [vmem:[%s547 + $0x7a] sm:$0xff]
        %v762 = vld [vmem:[%s547 + $0x82] sm:$0xff]
        %v763 = vld [vmem:[%s547 + $0x92] sm:$0xff]
        %v764 = vld [vmem:[%s547 + $0x9a] sm:$0xff]
        %v765 = vld [vmem:[%s547 + $0xaa] sm:$0xff]
        %v766 = vld [vmem:[%s547 + $0xb2] sm:$0xff]
        %v767 = vld [vmem:[%s547 + $0xc2] sm:$0xff]
        %v768 = vld [vmem:[%s547 + $0xca] sm:$0xff]
        %v769 = vld [vmem:[%s547 + $0xda] sm:$0xff]
        %v770 = vld [vmem:[%s547 + $0xe2] sm:$0xff]
        %v771 = vld [vmem:[%s547 + $0xf2] sm:$0xff]
        %v772 = vld [vmem:[%s547 + $0xfa] sm:$0xff]
        %v773 = vld [vmem:[%s547 + $0x10a] sm:$0xff]
        %v774 = vld [vmem:[%s547 + $0x112] sm:$0xff]
        %v775 = vld [vmem:[%s547 + $0x122] sm:$0xff]
        %v776 = vld [vmem:[%s547 + $0x12a] sm:$0xff]
        %v777 = vld [vmem:[%s547 + $0x13a] sm:$0xff]
        %v778 = vld [vmem:[%s547 + $0x142] sm:$0xff]
        %v779 = vld [vmem:[%s547 + $0x152] sm:$0xff]
        %v780 = vld [vmem:[%s547 + $0x15a] sm:$0xff]
        %v781 = vld [vmem:[%s547 + $0x16a] sm:$0xff]
        %v782 = vld [vmem:[%s547 + $0x172] sm:$0xff]
        %v783 = vld [vmem:[%s580 + $0x2] sm:$0x1]
        %v784 = vlaneseq
        %v785 = vshrl.u32 %v784, 7
        %v786 = vsub.s32 0, %v785
        %v787 = vrot.slane %v783, %v786
        %v788 = vmul.f32 %v751, %v787
        %v789 = vmul.f32 %v752, %v787
        %v790 = vmul.f32 %v753, %v787
        %v791 = vmul.f32 %v754, %v787
        %v792 = vmul.f32 %v755, %v787
        %v793 = vmul.f32 %v756, %v787
        %v794 = vmul.f32 %v757, %v787
        %v795 = vmul.f32 %v758, %v787
        %v796 = vmul.f32 %v759, %v787
        %v797 = vmul.f32 %v760, %v787
        %v798 = vmul.f32 %v761, %v787
        %v799 = vmul.f32 %v762, %v787
        %v800 = vmul.f32 %v763, %v787
        %v801 = vmul.f32 %v764, %v787
        %v802 = vmul.f32 %v765, %v787
        %v803 = vmul.f32 %v766, %v787
        %v804 = vmul.f32 %v767, %v787
        %v805 = vmul.f32 %v768, %v787
        %v806 = vmul.f32 %v769, %v787
        %v807 = vmul.f32 %v770, %v787
        %v808 = vmul.f32 %v771, %v787
        %v809 = vmul.f32 %v772, %v787
        %v810 = vmul.f32 %v773, %v787
        %v811 = vmul.f32 %v774, %v787
        %v812 = vmul.f32 %v775, %v787
        %v813 = vmul.f32 %v776, %v787
        %v814 = vmul.f32 %v777, %v787
        %v815 = vmul.f32 %v778, %v787
        %v816 = vmul.f32 %v779, %v787
        %v817 = vmul.f32 %v780, %v787
        %v818 = vmul.f32 %v781, %v787
        %v819 = vmul.f32 %v782, %v787
        %v820 = vadd.f32 %v719, %v788
        %v821 = vadd.f32 %v720, %v789
        %v822 = vadd.f32 %v721, %v790
        %v823 = vadd.f32 %v722, %v791
        %v824 = vadd.f32 %v723, %v792
        %v825 = vadd.f32 %v724, %v793
        %v826 = vadd.f32 %v725, %v794
        %v827 = vadd.f32 %v726, %v795
        %v828 = vadd.f32 %v727, %v796
        %v829 = vadd.f32 %v728, %v797
        %v830 = vadd.f32 %v729, %v798
        %v831 = vadd.f32 %v730, %v799
        %v832 = vadd.f32 %v731, %v800
        %v833 = vadd.f32 %v732, %v801
        %v834 = vadd.f32 %v733, %v802
        %v835 = vadd.f32 %v734, %v803
        %v836 = vadd.f32 %v735, %v804
        %v837 = vadd.f32 %v736, %v805
        %v838 = vadd.f32 %v737, %v806
        %v839 = vadd.f32 %v738, %v807
        %v840 = vadd.f32 %v739, %v808
        %v841 = vadd.f32 %v740, %v809
        %v842 = vadd.f32 %v741, %v810
        %v843 = vadd.f32 %v742, %v811
        %v844 = vadd.f32 %v743, %v812
        %v845 = vadd.f32 %v744, %v813
        %v846 = vadd.f32 %v745, %v814
        %v847 = vadd.f32 %v746, %v815
        %v848 = vadd.f32 %v747, %v816
        %v849 = vadd.f32 %v748, %v817
        %v850 = vadd.f32 %v749, %v818
        %v851 = vadd.f32 %v750, %v819
        %s852 = sadd.s32 %s239, 2
        %s853 = smul.u32 %s852, 24
        %s854 = scalar_lea.vmem %s236, %s853
        %v855 = vld [vmem:[%s854] sm:$0xff]
        %v856 = vld [vmem:[%s854 + $0x8] sm:$0xff]
        %v857 = vld [vmem:[%s854 + $0x18] sm:$0xff]
        %v858 = vld [vmem:[%s854 + $0x20] sm:$0xff]
        %v859 = vld [vmem:[%s854 + $0x30] sm:$0xff]
        %v860 = vld [vmem:[%s854 + $0x38] sm:$0xff]
        %v861 = vld [vmem:[%s854 + $0x48] sm:$0xff]
        %v862 = vld [vmem:[%s854 + $0x50] sm:$0xff]
        %v863 = vld [vmem:[%s854 + $0x60] sm:$0xff]
        %v864 = vld [vmem:[%s854 + $0x68] sm:$0xff]
        %v865 = vld [vmem:[%s854 + $0x78] sm:$0xff]
        %v866 = vld [vmem:[%s854 + $0x80] sm:$0xff]
        %v867 = vld [vmem:[%s854 + $0x90] sm:$0xff]
        %v868 = vld [vmem:[%s854 + $0x98] sm:$0xff]
        %v869 = vld [vmem:[%s854 + $0xa8] sm:$0xff]
        %v870 = vld [vmem:[%s854 + $0xb0] sm:$0xff]
        %v871 = vld [vmem:[%s854 + $0xc0] sm:$0xff]
        %v872 = vld [vmem:[%s854 + $0xc8] sm:$0xff]
        %v873 = vld [vmem:[%s854 + $0xd8] sm:$0xff]
        %v874 = vld [vmem:[%s854 + $0xe0] sm:$0xff]
        %v875 = vld [vmem:[%s854 + $0xf0] sm:$0xff]
        %v876 = vld [vmem:[%s854 + $0xf8] sm:$0xff]
        %v877 = vld [vmem:[%s854 + $0x108] sm:$0xff]
        %v878 = vld [vmem:[%s854 + $0x110] sm:$0xff]
        %v879 = vld [vmem:[%s854 + $0x120] sm:$0xff]
        %v880 = vld [vmem:[%s854 + $0x128] sm:$0xff]
        %v881 = vld [vmem:[%s854 + $0x138] sm:$0xff]
        %v882 = vld [vmem:[%s854 + $0x140] sm:$0xff]
        %v883 = vld [vmem:[%s854 + $0x150] sm:$0xff]
        %v884 = vld [vmem:[%s854 + $0x158] sm:$0xff]
        %v885 = vld [vmem:[%s854 + $0x168] sm:$0xff]
        %v886 = vld [vmem:[%s854 + $0x170] sm:$0xff]
        %s887 = scalar_lea.vmem %s1, 8
        %v888 = vld [vmem:[%s887] sm:$0x1]
        %v889 = vlaneseq
        %v890 = vshrl.u32 %v889, 7
        %v891 = vsub.s32 0, %v890
        %v892 = vrot.slane %v888, %v891
        %v893 = vmul.f32 %v855, %v892
        %v894 = vmul.f32 %v856, %v892
        %v895 = vmul.f32 %v857, %v892
        %v896 = vmul.f32 %v858, %v892
        %v897 = vmul.f32 %v859, %v892
        %v898 = vmul.f32 %v860, %v892
        %v899 = vmul.f32 %v861, %v892
        %v900 = vmul.f32 %v862, %v892
        %v901 = vmul.f32 %v863, %v892
        %v902 = vmul.f32 %v864, %v892
        %v903 = vmul.f32 %v865, %v892
        %v904 = vmul.f32 %v866, %v892
        %v905 = vmul.f32 %v867, %v892
        %v906 = vmul.f32 %v868, %v892
        %v907 = vmul.f32 %v869, %v892
        %v908 = vmul.f32 %v870, %v892
        %v909 = vmul.f32 %v871, %v892
        %v910 = vmul.f32 %v872, %v892
        %v911 = vmul.f32 %v873, %v892
        %v912 = vmul.f32 %v874, %v892
        %v913 = vmul.f32 %v875, %v892
        %v914 = vmul.f32 %v876, %v892
        %v915 = vmul.f32 %v877, %v892
        %v916 = vmul.f32 %v878, %v892
        %v917 = vmul.f32 %v879, %v892
        %v918 = vmul.f32 %v880, %v892
        %v919 = vmul.f32 %v881, %v892
        %v920 = vmul.f32 %v882, %v892
        %v921 = vmul.f32 %v883, %v892
        %v922 = vmul.f32 %v884, %v892
        %v923 = vmul.f32 %v885, %v892
        %v924 = vmul.f32 %v886, %v892
        %v925 = vadd.f32 %v820, %v893
        %v926 = vadd.f32 %v821, %v894
        %v927 = vadd.f32 %v822, %v895
        %v928 = vadd.f32 %v823, %v896
        %v929 = vadd.f32 %v824, %v897
        %v930 = vadd.f32 %v825, %v898
        %v931 = vadd.f32 %v826, %v899
        %v932 = vadd.f32 %v827, %v900
        %v933 = vadd.f32 %v828, %v901
        %v934 = vadd.f32 %v829, %v902
        %v935 = vadd.f32 %v830, %v903
        %v936 = vadd.f32 %v831, %v904
        %v937 = vadd.f32 %v832, %v905
        %v938 = vadd.f32 %v833, %v906
        %v939 = vadd.f32 %v834, %v907
        %v940 = vadd.f32 %v835, %v908
        %v941 = vadd.f32 %v836, %v909
        %v942 = vadd.f32 %v837, %v910
        %v943 = vadd.f32 %v838, %v911
        %v944 = vadd.f32 %v839, %v912
        %v945 = vadd.f32 %v840, %v913
        %v946 = vadd.f32 %v841, %v914
        %v947 = vadd.f32 %v842, %v915
        %v948 = vadd.f32 %v843, %v916
        %v949 = vadd.f32 %v844, %v917
        %v950 = vadd.f32 %v845, %v918
        %v951 = vadd.f32 %v846, %v919
        %v952 = vadd.f32 %v847, %v920
        %v953 = vadd.f32 %v848, %v921
        %v954 = vadd.f32 %v849, %v922
        %v955 = vadd.f32 %v850, %v923
        %v956 = vadd.f32 %v851, %v924
        %v957 = vld [vmem:[%s854 + $0x1] sm:$0xff]
        %v958 = vld [vmem:[%s854 + $0x9] sm:$0xff]
        %v959 = vld [vmem:[%s854 + $0x19] sm:$0xff]
        %v960 = vld [vmem:[%s854 + $0x21] sm:$0xff]
        %v961 = vld [vmem:[%s854 + $0x31] sm:$0xff]
        %v962 = vld [vmem:[%s854 + $0x39] sm:$0xff]
        %v963 = vld [vmem:[%s854 + $0x49] sm:$0xff]
        %v964 = vld [vmem:[%s854 + $0x51] sm:$0xff]
        %v965 = vld [vmem:[%s854 + $0x61] sm:$0xff]
        %v966 = vld [vmem:[%s854 + $0x69] sm:$0xff]
        %v967 = vld [vmem:[%s854 + $0x79] sm:$0xff]
        %v968 = vld [vmem:[%s854 + $0x81] sm:$0xff]
        %v969 = vld [vmem:[%s854 + $0x91] sm:$0xff]
        %v970 = vld [vmem:[%s854 + $0x99] sm:$0xff]
        %v971 = vld [vmem:[%s854 + $0xa9] sm:$0xff]
        %v972 = vld [vmem:[%s854 + $0xb1] sm:$0xff]
        %v973 = vld [vmem:[%s854 + $0xc1] sm:$0xff]
        %v974 = vld [vmem:[%s854 + $0xc9] sm:$0xff]
        %v975 = vld [vmem:[%s854 + $0xd9] sm:$0xff]
        %v976 = vld [vmem:[%s854 + $0xe1] sm:$0xff]
        %v977 = vld [vmem:[%s854 + $0xf1] sm:$0xff]
        %v978 = vld [vmem:[%s854 + $0xf9] sm:$0xff]
        %v979 = vld [vmem:[%s854 + $0x109] sm:$0xff]
        %v980 = vld [vmem:[%s854 + $0x111] sm:$0xff]
        %v981 = vld [vmem:[%s854 + $0x121] sm:$0xff]
        %v982 = vld [vmem:[%s854 + $0x129] sm:$0xff]
        %v983 = vld [vmem:[%s854 + $0x139] sm:$0xff]
        %v984 = vld [vmem:[%s854 + $0x141] sm:$0xff]
        %v985 = vld [vmem:[%s854 + $0x151] sm:$0xff]
        %v986 = vld [vmem:[%s854 + $0x159] sm:$0xff]
        %v987 = vld [vmem:[%s854 + $0x169] sm:$0xff]
        %v988 = vld [vmem:[%s854 + $0x171] sm:$0xff]
        %v989 = vld [vmem:[%s887 + $0x1] sm:$0x1]
        %v990 = vlaneseq
        %v991 = vshrl.u32 %v990, 7
        %v992 = vsub.s32 0, %v991
        %v993 = vrot.slane %v989, %v992
        %v994 = vmul.f32 %v957, %v993
        %v995 = vmul.f32 %v958, %v993
        %v996 = vmul.f32 %v959, %v993
        %v997 = vmul.f32 %v960, %v993
        %v998 = vmul.f32 %v961, %v993
        %v999 = vmul.f32 %v962, %v993
        %v1000 = vmul.f32 %v963, %v993
        %v1001 = vmul.f32 %v964, %v993
        %v1002 = vmul.f32 %v965, %v993
        %v1003 = vmul.f32 %v966, %v993
        %v1004 = vmul.f32 %v967, %v993
        %v1005 = vmul.f32 %v968, %v993
        %v1006 = vmul.f32 %v969, %v993
        %v1007 = vmul.f32 %v970, %v993
        %v1008 = vmul.f32 %v971, %v993
        %v1009 = vmul.f32 %v972, %v993
        %v1010 = vmul.f32 %v973, %v993
        %v1011 = vmul.f32 %v974, %v993
        %v1012 = vmul.f32 %v975, %v993
        %v1013 = vmul.f32 %v976, %v993
        %v1014 = vmul.f32 %v977, %v993
        %v1015 = vmul.f32 %v978, %v993
        %v1016 = vmul.f32 %v979, %v993
        %v1017 = vmul.f32 %v980, %v993
        %v1018 = vmul.f32 %v981, %v993
        %v1019 = vmul.f32 %v982, %v993
        %v1020 = vmul.f32 %v983, %v993
        %v1021 = vmul.f32 %v984, %v993
        %v1022 = vmul.f32 %v985, %v993
        %v1023 = vmul.f32 %v986, %v993
        %v1024 = vmul.f32 %v987, %v993
        %v1025 = vmul.f32 %v988, %v993
        %v1026 = vadd.f32 %v925, %v994
        %v1027 = vadd.f32 %v926, %v995
        %v1028 = vadd.f32 %v927, %v996
        %v1029 = vadd.f32 %v928, %v997
        %v1030 = vadd.f32 %v929, %v998
        %v1031 = vadd.f32 %v930, %v999
        %v1032 = vadd.f32 %v931, %v1000
        %v1033 = vadd.f32 %v932, %v1001
        %v1034 = vadd.f32 %v933, %v1002
        %v1035 = vadd.f32 %v934, %v1003
        %v1036 = vadd.f32 %v935, %v1004
        %v1037 = vadd.f32 %v936, %v1005
        %v1038 = vadd.f32 %v937, %v1006
        %v1039 = vadd.f32 %v938, %v1007
        %v1040 = vadd.f32 %v939, %v1008
        %v1041 = vadd.f32 %v940, %v1009
        %v1042 = vadd.f32 %v941, %v1010
        %v1043 = vadd.f32 %v942, %v1011
        %v1044 = vadd.f32 %v943, %v1012
        %v1045 = vadd.f32 %v944, %v1013
        %v1046 = vadd.f32 %v945, %v1014
        %v1047 = vadd.f32 %v946, %v1015
        %v1048 = vadd.f32 %v947, %v1016
        %v1049 = vadd.f32 %v948, %v1017
        %v1050 = vadd.f32 %v949, %v1018
        %v1051 = vadd.f32 %v950, %v1019
        %v1052 = vadd.f32 %v951, %v1020
        %v1053 = vadd.f32 %v952, %v1021
        %v1054 = vadd.f32 %v953, %v1022
        %v1055 = vadd.f32 %v954, %v1023
        %v1056 = vadd.f32 %v955, %v1024
        %v1057 = vadd.f32 %v956, %v1025
        %v1058 = vld [vmem:[%s854 + $0x2] sm:$0xff]
        %v1059 = vld [vmem:[%s854 + $0xa] sm:$0xff]
        %v1060 = vld [vmem:[%s854 + $0x1a] sm:$0xff]
        %v1061 = vld [vmem:[%s854 + $0x22] sm:$0xff]
        %v1062 = vld [vmem:[%s854 + $0x32] sm:$0xff]
        %v1063 = vld [vmem:[%s854 + $0x3a] sm:$0xff]
        %v1064 = vld [vmem:[%s854 + $0x4a] sm:$0xff]
        %v1065 = vld [vmem:[%s854 + $0x52] sm:$0xff]
        %v1066 = vld [vmem:[%s854 + $0x62] sm:$0xff]
        %v1067 = vld [vmem:[%s854 + $0x6a] sm:$0xff]
        %v1068 = vld [vmem:[%s854 + $0x7a] sm:$0xff]
        %v1069 = vld [vmem:[%s854 + $0x82] sm:$0xff]
        %v1070 = vld [vmem:[%s854 + $0x92] sm:$0xff]
        %v1071 = vld [vmem:[%s854 + $0x9a] sm:$0xff]
        %v1072 = vld [vmem:[%s854 + $0xaa] sm:$0xff]
        %v1073 = vld [vmem:[%s854 + $0xb2] sm:$0xff]
        %v1074 = vld [vmem:[%s854 + $0xc2] sm:$0xff]
        %v1075 = vld [vmem:[%s854 + $0xca] sm:$0xff]
        %v1076 = vld [vmem:[%s854 + $0xda] sm:$0xff]
        %v1077 = vld [vmem:[%s854 + $0xe2] sm:$0xff]
        %v1078 = vld [vmem:[%s854 + $0xf2] sm:$0xff]
        %v1079 = vld [vmem:[%s854 + $0xfa] sm:$0xff]
        %v1080 = vld [vmem:[%s854 + $0x10a] sm:$0xff]
        %v1081 = vld [vmem:[%s854 + $0x112] sm:$0xff]
        %v1082 = vld [vmem:[%s854 + $0x122] sm:$0xff]
        %v1083 = vld [vmem:[%s854 + $0x12a] sm:$0xff]
        %v1084 = vld [vmem:[%s854 + $0x13a] sm:$0xff]
        %v1085 = vld [vmem:[%s854 + $0x142] sm:$0xff]
        %v1086 = vld [vmem:[%s854 + $0x152] sm:$0xff]
        %v1087 = vld [vmem:[%s854 + $0x15a] sm:$0xff]
        %v1088 = vld [vmem:[%s854 + $0x16a] sm:$0xff]
        %v1089 = vld [vmem:[%s854 + $0x172] sm:$0xff]
        %v1090 = vld [vmem:[%s887 + $0x2] sm:$0x1]
        %v1091 = vlaneseq
        %v1092 = vshrl.u32 %v1091, 7
        %v1093 = vsub.s32 0, %v1092
        %v1094 = vrot.slane %v1090, %v1093
        %v1095 = vmul.f32 %v1058, %v1094
        %v1096 = vmul.f32 %v1059, %v1094
        %v1097 = vmul.f32 %v1060, %v1094
        %v1098 = vmul.f32 %v1061, %v1094
        %v1099 = vmul.f32 %v1062, %v1094
        %v1100 = vmul.f32 %v1063, %v1094
        %v1101 = vmul.f32 %v1064, %v1094
        %v1102 = vmul.f32 %v1065, %v1094
        %v1103 = vmul.f32 %v1066, %v1094
        %v1104 = vmul.f32 %v1067, %v1094
        %v1105 = vmul.f32 %v1068, %v1094
        %v1106 = vmul.f32 %v1069, %v1094
        %v1107 = vmul.f32 %v1070, %v1094
        %v1108 = vmul.f32 %v1071, %v1094
        %v1109 = vmul.f32 %v1072, %v1094
        %v1110 = vmul.f32 %v1073, %v1094
        %v1111 = vmul.f32 %v1074, %v1094
        %v1112 = vmul.f32 %v1075, %v1094
        %v1113 = vmul.f32 %v1076, %v1094
        %v1114 = vmul.f32 %v1077, %v1094
        %v1115 = vmul.f32 %v1078, %v1094
        %v1116 = vmul.f32 %v1079, %v1094
        %v1117 = vmul.f32 %v1080, %v1094
        %v1118 = vmul.f32 %v1081, %v1094
        %v1119 = vmul.f32 %v1082, %v1094
        %v1120 = vmul.f32 %v1083, %v1094
        %v1121 = vmul.f32 %v1084, %v1094
        %v1122 = vmul.f32 %v1085, %v1094
        %v1123 = vmul.f32 %v1086, %v1094
        %v1124 = vmul.f32 %v1087, %v1094
        %v1125 = vmul.f32 %v1088, %v1094
        %v1126 = vmul.f32 %v1089, %v1094
        %v1127 = vadd.f32 %v1026, %v1095
        %v1128 = vadd.f32 %v1027, %v1096
        %v1129 = vadd.f32 %v1028, %v1097
        %v1130 = vadd.f32 %v1029, %v1098
        %v1131 = vadd.f32 %v1030, %v1099
        %v1132 = vadd.f32 %v1031, %v1100
        %v1133 = vadd.f32 %v1032, %v1101
        %v1134 = vadd.f32 %v1033, %v1102
        %v1135 = vadd.f32 %v1034, %v1103
        %v1136 = vadd.f32 %v1035, %v1104
        %v1137 = vadd.f32 %v1036, %v1105
        %v1138 = vadd.f32 %v1037, %v1106
        %v1139 = vadd.f32 %v1038, %v1107
        %v1140 = vadd.f32 %v1039, %v1108
        %v1141 = vadd.f32 %v1040, %v1109
        %v1142 = vadd.f32 %v1041, %v1110
        %v1143 = vadd.f32 %v1042, %v1111
        %v1144 = vadd.f32 %v1043, %v1112
        %v1145 = vadd.f32 %v1044, %v1113
        %v1146 = vadd.f32 %v1045, %v1114
        %v1147 = vadd.f32 %v1046, %v1115
        %v1148 = vadd.f32 %v1047, %v1116
        %v1149 = vadd.f32 %v1048, %v1117
        %v1150 = vadd.f32 %v1049, %v1118
        %v1151 = vadd.f32 %v1050, %v1119
        %v1152 = vadd.f32 %v1051, %v1120
        %v1153 = vadd.f32 %v1052, %v1121
        %v1154 = vadd.f32 %v1053, %v1122
        %v1155 = vadd.f32 %v1054, %v1123
        %v1156 = vadd.f32 %v1055, %v1124
        %v1157 = vadd.f32 %v1056, %v1125
        %v1158 = vadd.f32 %v1057, %v1126
        %v1159 = vld [vmem:[%s2] sm:$0x1]
        %v1161 = vlaneseq
        %v1162 = vshrl.u32 %v1161, 7
        %v1163 = vsub.s32 0, %v1162
        %v1164 = vrot.slane %v1159, %v1163
        %v1166 = vadd.f32 %v1127, %v1164
        %v1167 = vadd.f32 %v1128, %v1164
        %v1168 = vadd.f32 %v1129, %v1164
        %v1169 = vadd.f32 %v1130, %v1164
        %v1170 = vadd.f32 %v1131, %v1164
        %v1171 = vadd.f32 %v1132, %v1164
        %v1172 = vadd.f32 %v1133, %v1164
        %v1173 = vadd.f32 %v1134, %v1164
        %v1174 = vadd.f32 %v1135, %v1164
        %v1175 = vadd.f32 %v1136, %v1164
        %v1176 = vadd.f32 %v1137, %v1164
        %v1177 = vadd.f32 %v1138, %v1164
        %v1178 = vadd.f32 %v1139, %v1164
        %v1179 = vadd.f32 %v1140, %v1164
        %v1180 = vadd.f32 %v1141, %v1164
        %v1181 = vadd.f32 %v1142, %v1164
        %v1182 = vadd.f32 %v1143, %v1164
        %v1183 = vadd.f32 %v1144, %v1164
        %v1184 = vadd.f32 %v1145, %v1164
        %v1185 = vadd.f32 %v1146, %v1164
        %v1186 = vadd.f32 %v1147, %v1164
        %v1187 = vadd.f32 %v1148, %v1164
        %v1188 = vadd.f32 %v1149, %v1164
        %v1189 = vadd.f32 %v1150, %v1164
        %v1190 = vadd.f32 %v1151, %v1164
        %v1191 = vadd.f32 %v1152, %v1164
        %v1192 = vadd.f32 %v1153, %v1164
        %v1193 = vadd.f32 %v1154, %v1164
        %v1194 = vadd.f32 %v1155, %v1164
        %v1195 = vadd.f32 %v1156, %v1164
        %v1196 = vadd.f32 %v1157, %v1164
        %v1197 = vadd.f32 %v1158, %v1164
        %vm1198 = vcmp.gt.f32.partialorder %v1166, 0.0
        %vm1199 = vcmp.gt.f32.partialorder %v1167, 0.0
        %vm1200 = vcmp.gt.f32.partialorder %v1168, 0.0
        %vm1201 = vcmp.gt.f32.partialorder %v1169, 0.0
        %vm1202 = vcmp.gt.f32.partialorder %v1170, 0.0
        %vm1203 = vcmp.gt.f32.partialorder %v1171, 0.0
        %vm1204 = vcmp.gt.f32.partialorder %v1172, 0.0
        %vm1205 = vcmp.gt.f32.partialorder %v1173, 0.0
        %vm1206 = vcmp.gt.f32.partialorder %v1174, 0.0
        %vm1207 = vcmp.gt.f32.partialorder %v1175, 0.0
        %vm1208 = vcmp.gt.f32.partialorder %v1176, 0.0
        %vm1209 = vcmp.gt.f32.partialorder %v1177, 0.0
        %vm1210 = vcmp.gt.f32.partialorder %v1178, 0.0
        %vm1211 = vcmp.gt.f32.partialorder %v1179, 0.0
        %vm1212 = vcmp.gt.f32.partialorder %v1180, 0.0
        %vm1213 = vcmp.gt.f32.partialorder %v1181, 0.0
        %vm1214 = vcmp.gt.f32.partialorder %v1182, 0.0
        %vm1215 = vcmp.gt.f32.partialorder %v1183, 0.0
        %vm1216 = vcmp.gt.f32.partialorder %v1184, 0.0
        %vm1217 = vcmp.gt.f32.partialorder %v1185, 0.0
        %vm1218 = vcmp.gt.f32.partialorder %v1186, 0.0
        %vm1219 = vcmp.gt.f32.partialorder %v1187, 0.0
        %vm1220 = vcmp.gt.f32.partialorder %v1188, 0.0
        %vm1221 = vcmp.gt.f32.partialorder %v1189, 0.0
        %vm1222 = vcmp.gt.f32.partialorder %v1190, 0.0
        %vm1223 = vcmp.gt.f32.partialorder %v1191, 0.0
        %vm1224 = vcmp.gt.f32.partialorder %v1192, 0.0
        %vm1225 = vcmp.gt.f32.partialorder %v1193, 0.0
        %vm1226 = vcmp.gt.f32.partialorder %v1194, 0.0
        %vm1227 = vcmp.gt.f32.partialorder %v1195, 0.0
        %vm1228 = vcmp.gt.f32.partialorder %v1196, 0.0
        %vm1229 = vcmp.gt.f32.partialorder %v1197, 0.0
        %v1230 = vmul.f32 %v1166, 0.01
        %v1231 = vmul.f32 %v1167, 0.01
        %v1232 = vmul.f32 %v1168, 0.01
        %v1233 = vmul.f32 %v1169, 0.01
        %v1234 = vmul.f32 %v1170, 0.01
        %v1235 = vmul.f32 %v1171, 0.01
        %v1236 = vmul.f32 %v1172, 0.01
        %v1237 = vmul.f32 %v1173, 0.01
        %v1238 = vmul.f32 %v1174, 0.01
        %v1239 = vmul.f32 %v1175, 0.01
        %v1240 = vmul.f32 %v1176, 0.01
        %v1241 = vmul.f32 %v1177, 0.01
        %v1242 = vmul.f32 %v1178, 0.01
        %v1243 = vmul.f32 %v1179, 0.01
        %v1244 = vmul.f32 %v1180, 0.01
        %v1245 = vmul.f32 %v1181, 0.01
        %v1246 = vmul.f32 %v1182, 0.01
        %v1247 = vmul.f32 %v1183, 0.01
        %v1248 = vmul.f32 %v1184, 0.01
        %v1249 = vmul.f32 %v1185, 0.01
        %v1250 = vmul.f32 %v1186, 0.01
        %v1251 = vmul.f32 %v1187, 0.01
        %v1252 = vmul.f32 %v1188, 0.01
        %v1253 = vmul.f32 %v1189, 0.01
        %v1254 = vmul.f32 %v1190, 0.01
        %v1255 = vmul.f32 %v1191, 0.01
        %v1256 = vmul.f32 %v1192, 0.01
        %v1257 = vmul.f32 %v1193, 0.01
        %v1258 = vmul.f32 %v1194, 0.01
        %v1259 = vmul.f32 %v1195, 0.01
        %v1260 = vmul.f32 %v1196, 0.01
        %v1261 = vmul.f32 %v1197, 0.01
        %v1262 = vsel %vm1198, %v1166, %v1230
        %v1263 = vsel %vm1199, %v1167, %v1231
        %v1264 = vsel %vm1200, %v1168, %v1232
        %v1265 = vsel %vm1201, %v1169, %v1233
        %v1266 = vsel %vm1202, %v1170, %v1234
        %v1267 = vsel %vm1203, %v1171, %v1235
        %v1268 = vsel %vm1204, %v1172, %v1236
        %v1269 = vsel %vm1205, %v1173, %v1237
        %v1270 = vsel %vm1206, %v1174, %v1238
        %v1271 = vsel %vm1207, %v1175, %v1239
        %v1272 = vsel %vm1208, %v1176, %v1240
        %v1273 = vsel %vm1209, %v1177, %v1241
        %v1274 = vsel %vm1210, %v1178, %v1242
        %v1275 = vsel %vm1211, %v1179, %v1243
        %v1276 = vsel %vm1212, %v1180, %v1244
        %v1277 = vsel %vm1213, %v1181, %v1245
        %v1278 = vsel %vm1214, %v1182, %v1246
        %v1279 = vsel %vm1215, %v1183, %v1247
        %v1280 = vsel %vm1216, %v1184, %v1248
        %v1281 = vsel %vm1217, %v1185, %v1249
        %v1282 = vsel %vm1218, %v1186, %v1250
        %v1283 = vsel %vm1219, %v1187, %v1251
        %v1284 = vsel %vm1220, %v1188, %v1252
        %v1285 = vsel %vm1221, %v1189, %v1253
        %v1286 = vsel %vm1222, %v1190, %v1254
        %v1287 = vsel %vm1223, %v1191, %v1255
        %v1288 = vsel %vm1224, %v1192, %v1256
        %v1289 = vsel %vm1225, %v1193, %v1257
        %v1290 = vsel %vm1226, %v1194, %v1258
        %v1291 = vsel %vm1227, %v1195, %v1259
        %v1292 = vsel %vm1228, %v1196, %v1260
        %v1293 = vsel %vm1229, %v1197, %v1261
        %v1294 = vpack.c.bf16 %v1263, %v1262
        %v1295 = vpack.c.bf16 %v1265, %v1264
        %v1296 = vpack.c.bf16 %v1267, %v1266
        %v1297 = vpack.c.bf16 %v1269, %v1268
        %v1298 = vpack.c.bf16 %v1271, %v1270
        %v1299 = vpack.c.bf16 %v1273, %v1272
        %v1300 = vpack.c.bf16 %v1275, %v1274
        %v1301 = vpack.c.bf16 %v1277, %v1276
        %v1302 = vpack.c.bf16 %v1279, %v1278
        %v1303 = vpack.c.bf16 %v1281, %v1280
        %v1304 = vpack.c.bf16 %v1283, %v1282
        %v1305 = vpack.c.bf16 %v1285, %v1284
        %v1306 = vpack.c.bf16 %v1287, %v1286
        %v1307 = vpack.c.bf16 %v1289, %v1288
        %v1308 = vpack.c.bf16 %v1291, %v1290
        %v1309 = vpack.c.bf16 %v1293, %v1292
        %v1310 = vld [vmem:[%s3] sm:$0xf]
        %v1311 = vld [vmem:[%s3 + $0x4] sm:$0xf]
        %v1312 = vld [vmem:[%s3 + $0x8] sm:$0xf]
        %v1313 = vld [vmem:[%s3 + $0xc] sm:$0xf]
        %v1314 = vld [vmem:[%s3 + $0x10] sm:$0xf]
        %v1315 = vld [vmem:[%s3 + $0x14] sm:$0xf]
        %v1316 = vld [vmem:[%s3 + $0x18] sm:$0xf]
        %v1317 = vld [vmem:[%s3 + $0x1c] sm:$0xf]
        %v1318 = vld [vmem:[%s3 + $0x20] sm:$0xf]
        %v1319 = vld [vmem:[%s3 + $0x24] sm:$0xf]
        %v1320 = vld [vmem:[%s3 + $0x28] sm:$0xf]
        %v1321 = vld [vmem:[%s3 + $0x2c] sm:$0xf]
        %v1322 = vld [vmem:[%s3 + $0x30] sm:$0xf]
        %v1323 = vld [vmem:[%s3 + $0x34] sm:$0xf]
        %v1324 = vld [vmem:[%s3 + $0x38] sm:$0xf]
        %v1325 = vld [vmem:[%s3 + $0x3c] sm:$0xf]
        %v1326 = vld [vmem:[%s4] sm:$0x1]
        %v1328 = vlaneseq
        %v1329 = vshrl.u32 %v1328, 7
        %v1330 = vsub.s32 0, %v1329
        %v1331 = vrot.slane %v1326, %v1330
        %v1349 = vunpack.c.l.b16 %v1310
        %v1350 = vunpack.c.l.b16 %v1311
        %v1351 = vunpack.c.l.b16 %v1312
        %v1352 = vunpack.c.l.b16 %v1313
        %v1353 = vunpack.c.l.b16 %v1314
        %v1354 = vunpack.c.l.b16 %v1315
        %v1355 = vunpack.c.l.b16 %v1316
        %v1356 = vunpack.c.l.b16 %v1317
        %v1357 = vunpack.c.l.b16 %v1318
        %v1358 = vunpack.c.l.b16 %v1319
        %v1359 = vunpack.c.l.b16 %v1320
        %v1360 = vunpack.c.l.b16 %v1321
        %v1361 = vunpack.c.l.b16 %v1322
        %v1362 = vunpack.c.l.b16 %v1323
        %v1363 = vunpack.c.l.b16 %v1324
        %v1364 = vunpack.c.l.b16 %v1325
        %v1365 = vpack.c.b16 %v1350, %v1349
        %v1366 = vpack.c.b16 %v1352, %v1351
        %v1367 = vpack.c.b16 %v1354, %v1353
        %v1368 = vpack.c.b16 %v1356, %v1355
        %v1369 = vpack.c.b16 %v1358, %v1357
        %v1370 = vpack.c.b16 %v1360, %v1359
        %v1371 = vpack.c.b16 %v1362, %v1361
        %v1372 = vpack.c.b16 %v1364, %v1363
        %1381 = vmatprep.subr.bf16.mxu0 0
        %1382 = vmatpush1.bf16.msra.mxu0 %v1365
        %1383 = vmatprep.subr.bf16.mxu0 0
        %1384 = vmatpush1.bf16.msra.mxu0 %v1366
        %1385 = vmatprep.subr.bf16.mxu0 0
        %1386 = vmatpush1.bf16.msra.mxu0 %v1367
        %1387 = vmatprep.subr.bf16.mxu0 0
        %1388 = vmatpush1.bf16.msra.mxu0 %v1368
        %1389 = vmatprep.subr.bf16.mxu0 0
        %1390 = vmatpush1.bf16.msra.mxu0 %v1369
        %1391 = vmatprep.subr.bf16.mxu0 0
        %1392 = vmatpush1.bf16.msra.mxu0 %v1370
        %1393 = vmatprep.subr.bf16.mxu0 0
        %1394 = vmatpush1.bf16.msra.mxu0 %v1371
        %1395 = vmatprep.subr.bf16.mxu0 0
        %1396 = vmatpush1.bf16.msra.mxu0 %v1372
        %1397 = vmatprep.subr.bf16.mxu0 0
        %1398 = vmatpush1.bf16.msra.mxu0 0
        %1399 = vmatprep.subr.bf16.mxu0 0
        %1400 = vmatpush1.bf16.msra.mxu0 0
        %1401 = vmatprep.subr.bf16.mxu0 0
        %1402 = vmatpush1.bf16.msra.mxu0 0
        %1403 = vmatprep.subr.bf16.mxu0 0
        %1404 = vmatpush1.bf16.msra.mxu0 0
        %1405 = vmatprep.subr.bf16.mxu0 0
        %1406 = vmatpush1.bf16.msra.mxu0 0
        %1407 = vmatprep.subr.bf16.mxu0 0
        %1408 = vmatpush1.bf16.msra.mxu0 0
        %1409 = vmatprep.subr.bf16.mxu0 0
        %1410 = vmatpush1.bf16.msra.mxu0 0
        %1411 = vmatprep.subr.bf16.mxu0 0
        %1412 = vmatpush1.bf16.msra.mxu0 0
        %1413 = vmatprep.mubr.bf16.mxu0 0
        %1414 = vmatmul.mubr.bf16.gmra.mrb[0].mxu0 %v1294
        %v1415 = vpop.f32.mrb[0].mxu0
        %v1416 = vadd.f32 %v1331, %v1415
        %v1417 = vpop.f32.mrb[0].mxu0
        %v1418 = vpop.f32.mrb[0].mxu0
        %v1419 = vadd.f32 %v1331, %v1418
        %v1420 = vpop.f32.mrb[0].mxu0
        %1421 = vmatprep.mubr.bf16.mxu0 0
        %1422 = vmatmul.mubr.bf16.gmra.mrb[0].mxu0 %v1295
        %v1423 = vpop.f32.mrb[0].mxu0
        %v1424 = vadd.f32 %v1331, %v1423
        %v1425 = vpop.f32.mrb[0].mxu0
        %v1426 = vpop.f32.mrb[0].mxu0
        %v1427 = vadd.f32 %v1331, %v1426
        %v1428 = vpop.f32.mrb[0].mxu0
        %1429 = vmatprep.mubr.bf16.mxu0 0
        %1430 = vmatmul.mubr.bf16.gmra.mrb[0].mxu0 %v1296
        %v1431 = vpop.f32.mrb[0].mxu0
        %v1432 = vadd.f32 %v1331, %v1431
        %v1433 = vpop.f32.mrb[0].mxu0
        %v1434 = vpop.f32.mrb[0].mxu0
        %v1435 = vadd.f32 %v1331, %v1434
        %v1436 = vpop.f32.mrb[0].mxu0
        %1437 = vmatprep.mubr.bf16.mxu0 0
        %1438 = vmatmul.mubr.bf16.gmra.mrb[0].mxu0 %v1297
        %v1439 = vpop.f32.mrb[0].mxu0
        %v1440 = vadd.f32 %v1331, %v1439
        %v1441 = vpop.f32.mrb[0].mxu0
        %v1442 = vpop.f32.mrb[0].mxu0
        %v1443 = vadd.f32 %v1331, %v1442
        %v1444 = vpop.f32.mrb[0].mxu0
        %1445 = vmatprep.mubr.bf16.mxu0 0
        %1446 = vmatmul.mubr.bf16.gmra.mrb[0].mxu0 %v1298
        %v1447 = vpop.f32.mrb[0].mxu0
        %v1448 = vadd.f32 %v1331, %v1447
        %v1449 = vpop.f32.mrb[0].mxu0
        %v1450 = vpop.f32.mrb[0].mxu0
        %v1451 = vadd.f32 %v1331, %v1450
        %v1452 = vpop.f32.mrb[0].mxu0
        %1453 = vmatprep.mubr.bf16.mxu0 0
        %1454 = vmatmul.mubr.bf16.gmra.mrb[0].mxu0 %v1299
        %v1455 = vpop.f32.mrb[0].mxu0
        %v1456 = vadd.f32 %v1331, %v1455
        %v1457 = vpop.f32.mrb[0].mxu0
        %v1458 = vpop.f32.mrb[0].mxu0
        %v1459 = vadd.f32 %v1331, %v1458
        %v1460 = vpop.f32.mrb[0].mxu0
        %1461 = vmatprep.mubr.bf16.mxu0 0
        %1462 = vmatmul.mubr.bf16.gmra.mrb[0].mxu0 %v1300
        %v1463 = vpop.f32.mrb[0].mxu0
        %v1464 = vadd.f32 %v1331, %v1463
        %v1465 = vpop.f32.mrb[0].mxu0
        %v1466 = vpop.f32.mrb[0].mxu0
        %v1467 = vadd.f32 %v1331, %v1466
        %v1468 = vpop.f32.mrb[0].mxu0
        %1469 = vmatprep.mubr.bf16.mxu0 0
        %1470 = vmatmul.mubr.bf16.gmra.mrb[0].mxu0 %v1301
        %v1471 = vpop.f32.mrb[0].mxu0
        %v1472 = vadd.f32 %v1331, %v1471
        %v1473 = vpop.f32.mrb[0].mxu0
        %v1474 = vpop.f32.mrb[0].mxu0
        %v1475 = vadd.f32 %v1331, %v1474
        %v1476 = vpop.f32.mrb[0].mxu0
        %1477 = vmatprep.mubr.bf16.mxu0 0
        %1478 = vmatmul.mubr.bf16.gmra.mrb[0].mxu0 %v1302
        %v1479 = vpop.f32.mrb[0].mxu0
        %v1480 = vadd.f32 %v1331, %v1479
        %v1481 = vpop.f32.mrb[0].mxu0
        %v1482 = vpop.f32.mrb[0].mxu0
        %v1483 = vadd.f32 %v1331, %v1482
        %v1484 = vpop.f32.mrb[0].mxu0
        %1485 = vmatprep.mubr.bf16.mxu0 0
        %1486 = vmatmul.mubr.bf16.gmra.mrb[0].mxu0 %v1303
        %v1487 = vpop.f32.mrb[0].mxu0
        %v1488 = vadd.f32 %v1331, %v1487
        %v1489 = vpop.f32.mrb[0].mxu0
        %v1490 = vpop.f32.mrb[0].mxu0
        %v1491 = vadd.f32 %v1331, %v1490
        %v1492 = vpop.f32.mrb[0].mxu0
        %1493 = vmatprep.mubr.bf16.mxu0 0
        %1494 = vmatmul.mubr.bf16.gmra.mrb[0].mxu0 %v1304
        %v1495 = vpop.f32.mrb[0].mxu0
        %v1496 = vadd.f32 %v1331, %v1495
        %v1497 = vpop.f32.mrb[0].mxu0
        %v1498 = vpop.f32.mrb[0].mxu0
        %v1499 = vadd.f32 %v1331, %v1498
        %v1500 = vpop.f32.mrb[0].mxu0
        %1501 = vmatprep.mubr.bf16.mxu0 0
        %1502 = vmatmul.mubr.bf16.gmra.mrb[0].mxu0 %v1305
        %v1503 = vpop.f32.mrb[0].mxu0
        %v1504 = vadd.f32 %v1331, %v1503
        %v1505 = vpop.f32.mrb[0].mxu0
        %v1506 = vpop.f32.mrb[0].mxu0
        %v1507 = vadd.f32 %v1331, %v1506
        %v1508 = vpop.f32.mrb[0].mxu0
        %1509 = vmatprep.mubr.bf16.mxu0 0
        %1510 = vmatmul.mubr.bf16.gmra.mrb[0].mxu0 %v1306
        %v1511 = vpop.f32.mrb[0].mxu0
        %v1512 = vadd.f32 %v1331, %v1511
        %v1513 = vpop.f32.mrb[0].mxu0
        %v1514 = vpop.f32.mrb[0].mxu0
        %v1515 = vadd.f32 %v1331, %v1514
        %v1516 = vpop.f32.mrb[0].mxu0
        %1517 = vmatprep.mubr.bf16.mxu0 0
        %1518 = vmatmul.mubr.bf16.gmra.mrb[0].mxu0 %v1307
        %v1519 = vpop.f32.mrb[0].mxu0
        %v1520 = vadd.f32 %v1331, %v1519
        %v1521 = vpop.f32.mrb[0].mxu0
        %v1522 = vpop.f32.mrb[0].mxu0
        %v1523 = vadd.f32 %v1331, %v1522
        %v1524 = vpop.f32.mrb[0].mxu0
        %1525 = vmatprep.mubr.bf16.mxu0 0
        %1526 = vmatmul.mubr.bf16.gmra.mrb[0].mxu0 %v1308
        %v1527 = vpop.f32.mrb[0].mxu0
        %v1528 = vadd.f32 %v1331, %v1527
        %v1529 = vpop.f32.mrb[0].mxu0
        %v1530 = vpop.f32.mrb[0].mxu0
        %v1531 = vadd.f32 %v1331, %v1530
        %v1532 = vpop.f32.mrb[0].mxu0
        %1533 = vmatprep.mubr.bf16.mxu0 0
        %1534 = vmatmul.mubr.bf16.gmra.mrb[0].mxu0 %v1309
        %v1535 = vpop.f32.mrb[0].mxu0
        %v1536 = vadd.f32 %v1331, %v1535
        %v1537 = vpop.f32.mrb[0].mxu0
        %v1538 = vpop.f32.mrb[0].mxu0
        %v1539 = vadd.f32 %v1331, %v1538
        %v1540 = vpop.f32.mrb[0].mxu0
        %1541 = vdwg.mxu0
        %vm1542 = vcmp.gt.f32.partialorder %v1416, 0.0
        %vm1543 = vcmp.gt.f32.partialorder %v1419, 0.0
        %vm1544 = vcmp.gt.f32.partialorder %v1424, 0.0
        %vm1545 = vcmp.gt.f32.partialorder %v1427, 0.0
        %vm1546 = vcmp.gt.f32.partialorder %v1432, 0.0
        %vm1547 = vcmp.gt.f32.partialorder %v1435, 0.0
        %vm1548 = vcmp.gt.f32.partialorder %v1440, 0.0
        %vm1549 = vcmp.gt.f32.partialorder %v1443, 0.0
        %vm1550 = vcmp.gt.f32.partialorder %v1448, 0.0
        %vm1551 = vcmp.gt.f32.partialorder %v1451, 0.0
        %vm1552 = vcmp.gt.f32.partialorder %v1456, 0.0
        %vm1553 = vcmp.gt.f32.partialorder %v1459, 0.0
        %vm1554 = vcmp.gt.f32.partialorder %v1464, 0.0
        %vm1555 = vcmp.gt.f32.partialorder %v1467, 0.0
        %vm1556 = vcmp.gt.f32.partialorder %v1472, 0.0
        %vm1557 = vcmp.gt.f32.partialorder %v1475, 0.0
        %vm1558 = vcmp.gt.f32.partialorder %v1480, 0.0
        %vm1559 = vcmp.gt.f32.partialorder %v1483, 0.0
        %vm1560 = vcmp.gt.f32.partialorder %v1488, 0.0
        %vm1561 = vcmp.gt.f32.partialorder %v1491, 0.0
        %vm1562 = vcmp.gt.f32.partialorder %v1496, 0.0
        %vm1563 = vcmp.gt.f32.partialorder %v1499, 0.0
        %vm1564 = vcmp.gt.f32.partialorder %v1504, 0.0
        %vm1565 = vcmp.gt.f32.partialorder %v1507, 0.0
        %vm1566 = vcmp.gt.f32.partialorder %v1512, 0.0
        %vm1567 = vcmp.gt.f32.partialorder %v1515, 0.0
        %vm1568 = vcmp.gt.f32.partialorder %v1520, 0.0
        %vm1569 = vcmp.gt.f32.partialorder %v1523, 0.0
        %vm1570 = vcmp.gt.f32.partialorder %v1528, 0.0
        %vm1571 = vcmp.gt.f32.partialorder %v1531, 0.0
        %vm1572 = vcmp.gt.f32.partialorder %v1536, 0.0
        %vm1573 = vcmp.gt.f32.partialorder %v1539, 0.0
        %v1574 = vmul.f32 %v1416, 0.01
        %v1575 = vmul.f32 %v1419, 0.01
        %v1576 = vmul.f32 %v1424, 0.01
        %v1577 = vmul.f32 %v1427, 0.01
        %v1578 = vmul.f32 %v1432, 0.01
        %v1579 = vmul.f32 %v1435, 0.01
        %v1580 = vmul.f32 %v1440, 0.01
        %v1581 = vmul.f32 %v1443, 0.01
        %v1582 = vmul.f32 %v1448, 0.01
        %v1583 = vmul.f32 %v1451, 0.01
        %v1584 = vmul.f32 %v1456, 0.01
        %v1585 = vmul.f32 %v1459, 0.01
        %v1586 = vmul.f32 %v1464, 0.01
        %v1587 = vmul.f32 %v1467, 0.01
        %v1588 = vmul.f32 %v1472, 0.01
        %v1589 = vmul.f32 %v1475, 0.01
        %v1590 = vmul.f32 %v1480, 0.01
        %v1591 = vmul.f32 %v1483, 0.01
        %v1592 = vmul.f32 %v1488, 0.01
        %v1593 = vmul.f32 %v1491, 0.01
        %v1594 = vmul.f32 %v1496, 0.01
        %v1595 = vmul.f32 %v1499, 0.01
        %v1596 = vmul.f32 %v1504, 0.01
        %v1597 = vmul.f32 %v1507, 0.01
        %v1598 = vmul.f32 %v1512, 0.01
        %v1599 = vmul.f32 %v1515, 0.01
        %v1600 = vmul.f32 %v1520, 0.01
        %v1601 = vmul.f32 %v1523, 0.01
        %v1602 = vmul.f32 %v1528, 0.01
        %v1603 = vmul.f32 %v1531, 0.01
        %v1604 = vmul.f32 %v1536, 0.01
        %v1605 = vmul.f32 %v1539, 0.01
        %v1606 = vsel %vm1542, %v1416, %v1574
        %v1607 = vsel %vm1543, %v1419, %v1575
        %v1608 = vsel %vm1544, %v1424, %v1576
        %v1609 = vsel %vm1545, %v1427, %v1577
        %v1610 = vsel %vm1546, %v1432, %v1578
        %v1611 = vsel %vm1547, %v1435, %v1579
        %v1612 = vsel %vm1548, %v1440, %v1580
        %v1613 = vsel %vm1549, %v1443, %v1581
        %v1614 = vsel %vm1550, %v1448, %v1582
        %v1615 = vsel %vm1551, %v1451, %v1583
        %v1616 = vsel %vm1552, %v1456, %v1584
        %v1617 = vsel %vm1553, %v1459, %v1585
        %v1618 = vsel %vm1554, %v1464, %v1586
        %v1619 = vsel %vm1555, %v1467, %v1587
        %v1620 = vsel %vm1556, %v1472, %v1588
        %v1621 = vsel %vm1557, %v1475, %v1589
        %v1622 = vsel %vm1558, %v1480, %v1590
        %v1623 = vsel %vm1559, %v1483, %v1591
        %v1624 = vsel %vm1560, %v1488, %v1592
        %v1625 = vsel %vm1561, %v1491, %v1593
        %v1626 = vsel %vm1562, %v1496, %v1594
        %v1627 = vsel %vm1563, %v1499, %v1595
        %v1628 = vsel %vm1564, %v1504, %v1596
        %v1629 = vsel %vm1565, %v1507, %v1597
        %v1630 = vsel %vm1566, %v1512, %v1598
        %v1631 = vsel %vm1567, %v1515, %v1599
        %v1632 = vsel %vm1568, %v1520, %v1600
        %v1633 = vsel %vm1569, %v1523, %v1601
        %v1634 = vsel %vm1570, %v1528, %v1602
        %v1635 = vsel %vm1571, %v1531, %v1603
        %v1636 = vsel %vm1572, %v1536, %v1604
        %v1637 = vsel %vm1573, %v1539, %v1605
        %1638 = vst [vmem:[%s231] sm:$0xff] %v1606
        %1639 = vst [vmem:[%s231 + $0x8] sm:$0xff] %v1607
        %1640 = vst [vmem:[%s231 + $0x10] sm:$0xff] %v1608
        %1641 = vst [vmem:[%s231 + $0x18] sm:$0xff] %v1609
        %1642 = vst [vmem:[%s231 + $0x20] sm:$0xff] %v1610
        %1643 = vst [vmem:[%s231 + $0x28] sm:$0xff] %v1611
        %1644 = vst [vmem:[%s231 + $0x30] sm:$0xff] %v1612
        %1645 = vst [vmem:[%s231 + $0x38] sm:$0xff] %v1613
        %1646 = vst [vmem:[%s231 + $0x40] sm:$0xff] %v1614
        %1647 = vst [vmem:[%s231 + $0x48] sm:$0xff] %v1615
        %1648 = vst [vmem:[%s231 + $0x50] sm:$0xff] %v1616
        %1649 = vst [vmem:[%s231 + $0x58] sm:$0xff] %v1617
        %1650 = vst [vmem:[%s231 + $0x60] sm:$0xff] %v1618
        %1651 = vst [vmem:[%s231 + $0x68] sm:$0xff] %v1619
        %1652 = vst [vmem:[%s231 + $0x70] sm:$0xff] %v1620
        %1653 = vst [vmem:[%s231 + $0x78] sm:$0xff] %v1621
        %1654 = vst [vmem:[%s231 + $0x80] sm:$0xff] %v1622
        %1655 = vst [vmem:[%s231 + $0x88] sm:$0xff] %v1623
        %1656 = vst [vmem:[%s231 + $0x90] sm:$0xff] %v1624
        %1657 = vst [vmem:[%s231 + $0x98] sm:$0xff] %v1625
        %1658 = vst [vmem:[%s231 + $0xa0] sm:$0xff] %v1626
        %1659 = vst [vmem:[%s231 + $0xa8] sm:$0xff] %v1627
        %1660 = vst [vmem:[%s231 + $0xb0] sm:$0xff] %v1628
        %1661 = vst [vmem:[%s231 + $0xb8] sm:$0xff] %v1629
        %1662 = vst [vmem:[%s231 + $0xc0] sm:$0xff] %v1630
        %1663 = vst [vmem:[%s231 + $0xc8] sm:$0xff] %v1631
        %1664 = vst [vmem:[%s231 + $0xd0] sm:$0xff] %v1632
        %1665 = vst [vmem:[%s231 + $0xd8] sm:$0xff] %v1633
        %1666 = vst [vmem:[%s231 + $0xe0] sm:$0xff] %v1634
        %1667 = vst [vmem:[%s231 + $0xe8] sm:$0xff] %v1635
        %1668 = vst [vmem:[%s231 + $0xf0] sm:$0xff] %v1636
        %1669 = vst [vmem:[%s231 + $0xf8] sm:$0xff] %v1637
        %s1670 = sand.u32 %s151, 1
        %s1671 = scalar_lea.sflag [#allocation3], %s1670
        %s1672 = sand.u32 %s151, 1
        %s1673 = smul.addr %s1672, 256
        %s1674 = scalar_lea.vmem [#allocation2], %s1673
        // Predicated region
        $region41: #{tpu_custom_call.1} parent=39 // pred_check
          %p1675 = pneg %p161
        $region42: #{tpu_custom_call.1} parent=39 // pred_check_branch
          %1677 = sbr.rel (%p1675) target = $region44
        $region43: #{tpu_custom_call.1} parent=39 // pred_region
          %s1678 = smul.u32 16, %s24
          %s1680 = ssub.s32 4096, 4096
          %1681 = vsyncadd %s1671, %s1680
          %s1682 = smul.addr %s1678, 2
          %s1683 = smul.addr %s23, 32
          %s1684 = sadd.s32 %s1682, %s1683
          %s1685 = smul.addr %s1684, 128
          %s1686 = scalar_lea.hbm %s5, %s1685
          %s1687 = sshll.u32 %s1674, 4
          %s1688 = int_to_ptr.vmem [resolvable:$true] %s1687
          %1693 = dma.vmem_to_hbm [thread:$0]  %s1688, 4096, %s1686, %s1671, 128, 128, 8
        $region44: #{tpu_custom_call.1} parent=39 // pred_fallthru
          _
      $region40: #{tpu_custom_call.1} parent=5 // pred_fallthru
        _
      %p1694 = scmp.le.s32.totalorder 2, %s14
      // Predicated region
      $region45: #{tpu_custom_call.1} parent=5 // pred_check
        %p1695 = pneg %p1694
      $region46: #{tpu_custom_call.1} parent=5 // pred_check_branch
        %1697 = sbr.rel (%p1695) target = $region48
      $region47: #{tpu_custom_call.1} parent=5 // pred_region
        %s1698 = ssub.s32 %s14, 2
        // Predicated region
        $region49: #{tpu_custom_call.1} parent=47 // pred_check
          %p1699 = pneg %p167
        $region50: #{tpu_custom_call.1} parent=47 // pred_check_branch
          %1701 = sbr.rel (%p1699) target = $region52
        $region51: #{tpu_custom_call.1} parent=47 // pred_region
          %s1702 = sand.u32 %s152, 1
          %s1703 = scalar_lea.sflag [#allocation3], %s1702
          %s1704 = sand.u32 %s152, 1
          %s1705 = smul.addr %s1704, 256
          %s1706 = scalar_lea.vmem [#allocation2], %s1705
          %1707 = dma.done %s1703, 4096
        $region52: #{tpu_custom_call.1} parent=47 // pred_fallthru
          _
      $region48: #{tpu_custom_call.1} parent=5 // pred_fallthru
        _
    $region6: #{tpu_custom_call.1} parent=1 // loop_footer
      %s18 = sadd.s32 1, %s14
    $region7: #{tpu_custom_call.1} parent=1 // loop_footer_branch
      %13 = sbr.rel target = $region3
    $region8: #{tpu_custom_call.1} parent=1 // loop_exit
      _
    %1708 = vsyncpa [#allocation3], 1
    %s1709 = scalar_lea.sflag [#allocation3], 1
    %1710 = vsyncpa %s1709, 1

</llo_original>
